<compile_context>
chip_gen: v7x
topology: tpu7x:2x2x1
jax: 0.10.0
libtpu: 0.0.40
codegen_flags: <defaults>
</compile_context>

<pallas_src>
import jax
import jax.numpy as jnp
from jax.experimental import pallas as pl
from jax.experimental.pallas import tpu as pltpu

block_size = 8        # T
n_embd = 32           # C (== head_size)
vocab_size = 65       # synthetic vocabulary size (df / corpus not available)
VOCAB_PAD = 128       # lane-dense padded vocab for the kernel


def _bigram_kernel(idx_ref, pos_ref, tok_tab_ref, wk_ref, wq_ref, wv_ref,
                   wlm_ref, blm_ref, out_ref):
    # idx_ref:     (Bt, T, 1) int32
    # pos_ref:     (T, C) f32
    # tok_tab_ref: (Vp, C) bf16   (rows >= vocab_size are zero)
    # wk/wq/wv:    (C, C) bf16
    # wlm_ref:     (C, Vp) bf16   (cols >= vocab_size are zero)
    # blm_ref:     (1, Vp) f32    (cols >= vocab_size are zero)
    # out_ref:     (Bt, T, Vp) f32
    Bt, T, _ = idx_ref.shape
    C = pos_ref.shape[1]
    Vp = tok_tab_ref.shape[0]
    N = Bt * T

    # --- token-embedding gather on-chip: one-hot matmul on the MXU ---
    idx = idx_ref[...]                                              # (Bt, T, 1)
    lanes = jax.lax.broadcasted_iota(jnp.int32, (Bt, T, Vp), 2)
    onehot = (lanes == idx).astype(jnp.bfloat16)                    # (Bt, T, Vp)
    tok = jnp.dot(onehot.reshape(N, Vp), tok_tab_ref[...],
                  preferred_element_type=jnp.float32)               # (N, C) f32

    # --- add position embedding ---
    x = tok.reshape(Bt, T, C) + pos_ref[...][None, :, :]            # (Bt, T, C)

    # --- Q, K, V projections: bf16 MXU inputs, f32 accumulation ---
    xb = x.reshape(N, C).astype(jnp.bfloat16)
    q = jnp.dot(xb, wq_ref[...],
                preferred_element_type=jnp.float32).reshape(Bt, T, C)
    k = jnp.dot(xb, wk_ref[...],
                preferred_element_type=jnp.float32).reshape(Bt, T, C)
    v = jnp.dot(xb, wv_ref[...],
                preferred_element_type=jnp.float32).reshape(Bt, T, C)

    # --- attention scores; head_size = n_embd (value the Head was built with) ---
    scale = 1.0 / (float(n_embd) ** 0.5)
    s = jnp.einsum('bqc,bkc->bqk', q, k,
                   preferred_element_type=jnp.float32) * scale      # (Bt, T, T)

    # causal mask: tril == 0 (key index > query index) -> -inf
    qi = jax.lax.broadcasted_iota(jnp.int32, (Bt, T, T), 1)          # query idx
    ki = jax.lax.broadcasted_iota(jnp.int32, (Bt, T, T), 2)          # key idx
    s = jnp.where(ki > qi, jnp.float32(-jnp.inf), s)

    # Faithful to the reference: softmax over dim=1 of (B,T,T) = the QUERY axis.
    m = jnp.max(s, axis=1, keepdims=True)
    e = jnp.exp(s - m)
    w = e / jnp.sum(e, axis=1, keepdims=True)                        # (Bt, T, T)

    attn = jnp.einsum('bqk,bkc->bqc', w, v,
                      preferred_element_type=jnp.float32)            # (Bt, T, C)

    # --- lm_head (padded, lane-dense output) ---
    logits = jnp.dot(attn.reshape(N, C).astype(jnp.bfloat16), wlm_ref[...],
                     preferred_element_type=jnp.float32) + blm_ref[...]
    out_ref[...] = logits.reshape(Bt, T, Vp)


def bigram_forward(idx, params, *, batch_block=512):
    """idx: (B, T) int.  Returns (logits (B, T, vocab_size) f32, loss=None)."""
    B, T = idx.shape
    assert T == block_size

    # Batch block: multiple of 8 (sublane alignment), capped for VMEM.
    Bt = max(8, min(batch_block, ((B + 7) // 8) * 8))
    Bt = ((Bt + 7) // 8) * 8
    n_blocks = -(-B // Bt)
    B_pad = n_blocks * Bt

    idx = idx.astype(jnp.int32)
    if B_pad != B:
        idx = jnp.pad(idx, ((0, B_pad - B), (0, 0)))   # padded rows use token 0
    idx3 = idx.reshape(B_pad, T, 1)

    out = pl.pallas_call(
        _bigram_kernel,
        out_shape=jax.ShapeDtypeStruct((B_pad, T, VOCAB_PAD), jnp.float32),
        grid_spec=pltpu.PrefetchScalarGridSpec(
            num_scalar_prefetch=0,
            grid=(n_blocks,),
            in_specs=[
                pl.BlockSpec((Bt, T, 1), lambda b: (b, 0, 0)),          # idx
                pl.BlockSpec((T, n_embd), lambda b: (0, 0)),            # pos
                pl.BlockSpec((VOCAB_PAD, n_embd), lambda b: (0, 0)),    # tok table
                pl.BlockSpec((n_embd, n_embd), lambda b: (0, 0)),       # Wk
                pl.BlockSpec((n_embd, n_embd), lambda b: (0, 0)),       # Wq
                pl.BlockSpec((n_embd, n_embd), lambda b: (0, 0)),       # Wv
                pl.BlockSpec((n_embd, VOCAB_PAD), lambda b: (0, 0)),    # Wlm
                pl.BlockSpec((1, VOCAB_PAD), lambda b: (0, 0)),         # blm
            ],
            out_specs=pl.BlockSpec((Bt, T, VOCAB_PAD), lambda b: (b, 0, 0)),
        ),
        compiler_params=pltpu.CompilerParams(
            dimension_semantics=("parallel",)),
    )(idx3, params["pos_table"], params["tok_table_p"],
      params["wk"], params["wq"], params["wv"],
      params["w_lm_p"], params["b_lm_p"])

    logits = out[:B, :, :vocab_size]
    # targets=None path of the reference -> loss is None
    return logits, None


def init_params(key):
    ks = jax.random.split(key, 7)
    s = 0.02
    tok = jax.random.normal(ks[0], (vocab_size, n_embd), jnp.float32) * s
    pos = jax.random.normal(ks[1], (block_size, n_embd), jnp.float32) * s
    # Linear(n_embd, head_size, bias=False) stored as (in, out): x @ W.
    wk = jax.random.normal(ks[2], (n_embd, n_embd), jnp.float32) * s
    wq = jax.random.normal(ks[3], (n_embd, n_embd), jnp.float32) * s
    wv = jax.random.normal(ks[4], (n_embd, n_embd), jnp.float32) * s
    wlm = jax.random.normal(ks[5], (n_embd, vocab_size), jnp.float32) * s
    blm = jax.random.normal(ks[6], (1, vocab_size), jnp.float32) * s

    # Kernel-ready forms (padded vocab -> 128 lanes, bf16 MXU operands),
    # built once outside the hot path.  Padded rows/cols are zero.
    tok_p = jnp.zeros((VOCAB_PAD, n_embd), jnp.bfloat16)
    tok_p = tok_p.at[:vocab_size].set(tok.astype(jnp.bfloat16))
    wlm_p = jnp.zeros((n_embd, VOCAB_PAD), jnp.bfloat16)
    wlm_p = wlm_p.at[:, :vocab_size].set(wlm.astype(jnp.bfloat16))
    blm_p = jnp.zeros((1, VOCAB_PAD), jnp.float32)
    blm_p = blm_p.at[:, :vocab_size].set(blm)

    return {
        "tok_table_p": tok_p,
        "pos_table": pos,
        "wk": wk.astype(jnp.bfloat16),
        "wq": wq.astype(jnp.bfloat16),
        "wv": wv.astype(jnp.bfloat16),
        "w_lm_p": wlm_p,
        "b_lm_p": blm_p,
    }


if __name__ == "__main__":
    key = jax.random.PRNGKey(0)
    pkey, ikey = jax.random.split(key)
    params = init_params(pkey)

    B, T = 12, block_size
    idx = jax.random.randint(ikey, (B, T), 0, vocab_size, dtype=jnp.int32)

    # batch_block=8 -> B padded to 16, grid has 2 steps (exercises the
    # batch-blocked path, padding, and the parallel grid axis).
    logits, loss = bigram_forward(idx, params, batch_block=8)
    logits = jax.block_until_ready(logits)

    assert logits.shape == (B, T, vocab_size)
    assert logits.dtype == jnp.float32
    assert loss is None
    assert bool(jnp.all(jnp.isfinite(logits)))
    print("KERNEL_OK")
</pallas_src>

<mosaic_0001>
module attributes {stable_mosaic.version = 11 : i64} {
  func.func @_bigram_kernel(%arg0: i32, %arg1: memref<8x8x1xi32, #tpu.memory_space<vmem>>, %arg2: memref<8x32xf32, #tpu.memory_space<vmem>>, %arg3: memref<128x32xbf16, #tpu.memory_space<vmem>>, %arg4: memref<32x32xbf16, #tpu.memory_space<vmem>>, %arg5: memref<32x32xbf16, #tpu.memory_space<vmem>>, %arg6: memref<32x32xbf16, #tpu.memory_space<vmem>>, %arg7: memref<32x128xbf16, #tpu.memory_space<vmem>>, %arg8: memref<1x128xf32, #tpu.memory_space<vmem>>, %arg9: memref<8x8x128xf32, #tpu.memory_space<vmem>>) attributes {dimension_semantics = [#tpu.dimension_semantics<parallel>], iteration_bounds = array<i64: 2>, scalar_prefetch = 0 : i64, scratch_operands = 0 : i64, tpu.core_type = #tpu.core_type<tc>, window_params = [{transform_indices = @transform_0, window_bounds = array<i64: 8, 8, 1>}, {pipeline_mode = #tpu.pipeline_mode<synchronous>, transform_indices = @transform_1, window_bounds = array<i64: 8, 32>}, {pipeline_mode = #tpu.pipeline_mode<synchronous>, transform_indices = @transform_2, window_bounds = array<i64: 128, 32>}, {pipeline_mode = #tpu.pipeline_mode<synchronous>, transform_indices = @transform_3, window_bounds = array<i64: 32, 32>}, {pipeline_mode = #tpu.pipeline_mode<synchronous>, transform_indices = @transform_4, window_bounds = array<i64: 32, 32>}, {pipeline_mode = #tpu.pipeline_mode<synchronous>, transform_indices = @transform_5, window_bounds = array<i64: 32, 32>}, {pipeline_mode = #tpu.pipeline_mode<synchronous>, transform_indices = @transform_6, window_bounds = array<i64: 32, 128>}, {pipeline_mode = #tpu.pipeline_mode<synchronous>, transform_indices = @transform_7, window_bounds = array<i64: 1, 128>}, {transform_indices = @transform_8, window_bounds = array<i64: 8, 8, 128>}]} {
    %c0 = arith.constant 0 : index
    %c0_0 = arith.constant 0 : index
    %c0_1 = arith.constant 0 : index
    %0 = vector.load %arg1[%c0, %c0_0, %c0_1] : memref<8x8x1xi32, #tpu.memory_space<vmem>>, vector<8x8x1xi32>
    %1 = tpu.iota {dimensions = array<i32: 2>} : vector<8x8x128xi32>
    %2 = vector.broadcast %0 : vector<8x8x1xi32> to vector<8x8x128xi32>
    %3 = arith.cmpi eq, %1, %2 : vector<8x8x128xi32>
    %4 = arith.extui %3 : vector<8x8x128xi1> to vector<8x8x128xi32>
    %5 = arith.sitofp %4 : vector<8x8x128xi32> to vector<8x8x128xf32>
    %6 = arith.truncf %5 : vector<8x8x128xf32> to vector<8x8x128xbf16>
    %7 = vector.shape_cast %6 : vector<8x8x128xbf16> to vector<64x128xbf16>
    %c0_2 = arith.constant 0 : index
    %c0_3 = arith.constant 0 : index
    %8 = vector.load %arg3[%c0_2, %c0_3] : memref<128x32xbf16, #tpu.memory_space<vmem>>, vector<128x32xbf16>
    %cst = arith.constant dense<0.000000e+00> : vector<64x32xf32>
    %9 = tpu.matmul %7, %8, %cst {dimension_numbers = #tpu.dot_dimension_numbers<[1], [0], [0], [1], [0, 0, 1, 1], [], []>} : vector<64x128xbf16>, vector<128x32xbf16>, vector<64x32xf32> -> vector<64x32xf32>
    %10 = vector.shape_cast %9 : vector<64x32xf32> to vector<8x8x32xf32>
    %c0_4 = arith.constant 0 : index
    %c0_5 = arith.constant 0 : index
    %11 = vector.load %arg2[%c0_4, %c0_5] : memref<8x32xf32, #tpu.memory_space<vmem>>, vector<8x32xf32>
    %12 = vector.shape_cast %11 : vector<8x32xf32> to vector<1x8x32xf32>
    %13 = vector.broadcast %12 : vector<1x8x32xf32> to vector<8x8x32xf32>
    %14 = arith.addf %10, %13 : vector<8x8x32xf32>
    %15 = vector.shape_cast %14 : vector<8x8x32xf32> to vector<64x32xf32>
    %16 = arith.truncf %15 : vector<64x32xf32> to vector<64x32xbf16>
    %c0_6 = arith.constant 0 : index
    %c0_7 = arith.constant 0 : index
    %17 = vector.load %arg5[%c0_6, %c0_7] : memref<32x32xbf16, #tpu.memory_space<vmem>>, vector<32x32xbf16>
    %cst_8 = arith.constant dense<0.000000e+00> : vector<64x32xf32>
    %18 = tpu.matmul %16, %17, %cst_8 {dimension_numbers = #tpu.dot_dimension_numbers<[1], [0], [0], [1], [0, 0, 1, 1], [], []>} : vector<64x32xbf16>, vector<32x32xbf16>, vector<64x32xf32> -> vector<64x32xf32>
    %19 = vector.shape_cast %18 : vector<64x32xf32> to vector<8x8x32xf32>
    %c0_9 = arith.constant 0 : index
    %c0_10 = arith.constant 0 : index
    %20 = vector.load %arg4[%c0_9, %c0_10] : memref<32x32xbf16, #tpu.memory_space<vmem>>, vector<32x32xbf16>
    %cst_11 = arith.constant dense<0.000000e+00> : vector<64x32xf32>
    %21 = tpu.matmul %16, %20, %cst_11 {dimension_numbers = #tpu.dot_dimension_numbers<[1], [0], [0], [1], [0, 0, 1, 1], [], []>} : vector<64x32xbf16>, vector<32x32xbf16>, vector<64x32xf32> -> vector<64x32xf32>
    %22 = vector.shape_cast %21 : vector<64x32xf32> to vector<8x8x32xf32>
    %c0_12 = arith.constant 0 : index
    %c0_13 = arith.constant 0 : index
    %23 = vector.load %arg6[%c0_12, %c0_13] : memref<32x32xbf16, #tpu.memory_space<vmem>>, vector<32x32xbf16>
    %cst_14 = arith.constant dense<0.000000e+00> : vector<64x32xf32>
    %24 = tpu.matmul %16, %23, %cst_14 {dimension_numbers = #tpu.dot_dimension_numbers<[1], [0], [0], [1], [0, 0, 1, 1], [], []>} : vector<64x32xbf16>, vector<32x32xbf16>, vector<64x32xf32> -> vector<64x32xf32>
    %25 = vector.shape_cast %24 : vector<64x32xf32> to vector<8x8x32xf32>
    "tpu.trace_start"() <{level = 10 : i32, message = "bqc,bkc->bqk"}> : () -> ()
    %cst_15 = arith.constant dense<0.000000e+00> : vector<8x8x8xf32>
    %26 = tpu.matmul %19, %22, %cst_15 {dimension_numbers = #tpu.dot_dimension_numbers<[2], [2], [1], [1], [0, 0, 0, 1, 1, 1], [0], [0]>} : vector<8x8x32xf32>, vector<8x8x32xf32>, vector<8x8x8xf32> -> vector<8x8x8xf32>
    "tpu.trace_stop"() : () -> ()
    %cst_16 = arith.constant 0.176776692 : f32
    %27 = vector.broadcast %cst_16 : f32 to vector<8x8x8xf32>
    %28 = arith.mulf %26, %27 : vector<8x8x8xf32>
    %29 = tpu.iota {dimensions = array<i32: 1>} : vector<8x8x8xi32>
    %30 = tpu.iota {dimensions = array<i32: 2>} : vector<8x8x8xi32>
    %31 = arith.cmpi sgt, %30, %29 : vector<8x8x8xi32>
    %cst_17 = arith.constant 0xFF800000 : f32
    %32 = vector.broadcast %cst_17 : f32 to vector<8x8x8xf32>
    %33 = arith.select %31, %32, %28 : vector<8x8x8xi1>, vector<8x8x8xf32>
    %cst_18 = arith.constant dense<0xFF800000> : vector<8x8xf32>
    %34 = vector.multi_reduction <maximumf>, %33, %cst_18 [1] : vector<8x8x8xf32> to vector<8x8xf32>
    %35 = vector.shape_cast %34 : vector<8x8xf32> to vector<8x1x8xf32>
    %36 = vector.broadcast %35 : vector<8x1x8xf32> to vector<8x8x8xf32>
    %37 = arith.subf %33, %36 : vector<8x8x8xf32>
    %38 = math.exp %37 : vector<8x8x8xf32>
    %cst_19 = arith.constant dense<0.000000e+00> : vector<8x8xf32>
    %39 = vector.multi_reduction <add>, %38, %cst_19 [1] : vector<8x8x8xf32> to vector<8x8xf32>
    %40 = vector.shape_cast %39 : vector<8x8xf32> to vector<8x1x8xf32>
    %41 = vector.broadcast %40 : vector<8x1x8xf32> to vector<8x8x8xf32>
    %42 = arith.divf %38, %41 : vector<8x8x8xf32>
    "tpu.trace_start"() <{level = 10 : i32, message = "bqk,bkc->bqc"}> : () -> ()
    %cst_20 = arith.constant dense<0.000000e+00> : vector<8x8x32xf32>
    %43 = tpu.matmul %42, %25, %cst_20 {dimension_numbers = #tpu.dot_dimension_numbers<[2], [1], [1], [2], [0, 0, 0, 1, 1, 2], [0], [0]>} : vector<8x8x8xf32>, vector<8x8x32xf32>, vector<8x8x32xf32> -> vector<8x8x32xf32>
    "tpu.trace_stop"() : () -> ()
    %44 = vector.shape_cast %43 : vector<8x8x32xf32> to vector<64x32xf32>
    %45 = arith.truncf %44 : vector<64x32xf32> to vector<64x32xbf16>
    %c0_21 = arith.constant 0 : index
    %c0_22 = arith.constant 0 : index
    %46 = vector.load %arg7[%c0_21, %c0_22] : memref<32x128xbf16, #tpu.memory_space<vmem>>, vector<32x128xbf16>
    %cst_23 = arith.constant dense<0.000000e+00> : vector<64x128xf32>
    %47 = tpu.matmul %45, %46, %cst_23 {dimension_numbers = #tpu.dot_dimension_numbers<[1], [0], [0], [1], [0, 0, 1, 1], [], []>} : vector<64x32xbf16>, vector<32x128xbf16>, vector<64x128xf32> -> vector<64x128xf32>
    %c0_24 = arith.constant 0 : index
    %c0_25 = arith.constant 0 : index
    %48 = vector.load %arg8[%c0_24, %c0_25] : memref<1x128xf32, #tpu.memory_space<vmem>>, vector<1x128xf32>
    %49 = vector.broadcast %48 : vector<1x128xf32> to vector<64x128xf32>
    %50 = arith.addf %47, %49 : vector<64x128xf32>
    %51 = vector.shape_cast %50 : vector<64x128xf32> to vector<8x8x128xf32>
    %c0_26 = arith.constant 0 : index
    %c0_27 = arith.constant 0 : index
    %c0_28 = arith.constant 0 : index
    %52 = vector.load %arg9[%c0_26, %c0_27, %c0_28] : memref<8x8x128xf32, #tpu.memory_space<vmem>>, vector<8x8x128xf32>
    tpu.vector_store %arg9[%c0_26, %c0_27, %c0_28], %51 {strides = array<i32>} : memref<8x8x128xf32, #tpu.memory_space<vmem>>, vector<8x8x128xf32>,
    return
  }
  func.func @transform_0(%arg0: i32) -> (i32, i32, i32) {
    %c0_i32 = arith.constant 0 : i32
    %c0_i32_0 = arith.constant 0 : i32
    %c0_i32_1 = arith.constant 0 : i32
    return %arg0, %c0_i32, %c0_i32_0 : i32, i32, i32
  }
  func.func @transform_1(%arg0: i32) -> (i32, i32) {
    %c0_i32 = arith.constant 0 : i32
    %c0_i32_0 = arith.constant 0 : i32
    %c0_i32_1 = arith.constant 0 : i32
    return %c0_i32, %c0_i32_0 : i32, i32
  }
  func.func @transform_2(%arg0: i32) -> (i32, i32) {
    %c0_i32 = arith.constant 0 : i32
    %c0_i32_0 = arith.constant 0 : i32
    %c0_i32_1 = arith.constant 0 : i32
    return %c0_i32, %c0_i32_0 : i32, i32
  }
  func.func @transform_3(%arg0: i32) -> (i32, i32) {
    %c0_i32 = arith.constant 0 : i32
    %c0_i32_0 = arith.constant 0 : i32
    %c0_i32_1 = arith.constant 0 : i32
    return %c0_i32, %c0_i32_0 : i32, i32
  }
  func.func @transform_4(%arg0: i32) -> (i32, i32) {
    %c0_i32 = arith.constant 0 : i32
    %c0_i32_0 = arith.constant 0 : i32
    %c0_i32_1 = arith.constant 0 : i32
    return %c0_i32, %c0_i32_0 : i32, i32
  }
  func.func @transform_5(%arg0: i32) -> (i32, i32) {
    %c0_i32 = arith.constant 0 : i32
    %c0_i32_0 = arith.constant 0 : i32
    %c0_i32_1 = arith.constant 0 : i32
    return %c0_i32, %c0_i32_0 : i32, i32
  }
  func.func @transform_6(%arg0: i32) -> (i32, i32) {
    %c0_i32 = arith.constant 0 : i32
    %c0_i32_0 = arith.constant 0 : i32
    %c0_i32_1 = arith.constant 0 : i32
    return %c0_i32, %c0_i32_0 : i32, i32
  }
  func.func @transform_7(%arg0: i32) -> (i32, i32) {
    %c0_i32 = arith.constant 0 : i32
    %c0_i32_0 = arith.constant 0 : i32
    %c0_i32_1 = arith.constant 0 : i32
    return %c0_i32, %c0_i32_0 : i32, i32
  }
  func.func @transform_8(%arg0: i32) -> (i32, i32, i32) {
    %c0_i32 = arith.constant 0 : i32
    %c0_i32_0 = arith.constant 0 : i32
    %c0_i32_1 = arith.constant 0 : i32
    return %arg0, %c0_i32, %c0_i32_0 : i32, i32, i32
  }
}

</mosaic_0001>

<llo_original>
// kernel: tpu_custom_call.1
$region0: #{tpu_custom_call.1}
  #allocation0 [shape = 'u32[]', space=smem, size = 0x4, offset = 0x4, fixed_abs, tag = 'smem constant byte address 0x4 - core index']
  #allocation1 [shape = 'u32[144,128]{1,0:T(1,128)}', space=vmem, size = 0x12000, scoped, tag = 'internal scratch']
  %s0 = inlined_call_operand.vmem [shape: s32[16,8,1], index: 0, kind: input, shape index: {}]
  %s1 = inlined_call_operand.vmem [shape: f32[8,32], index: 1, kind: input, shape index: {}]
  %s2 = inlined_call_operand.vmem [shape: bf16[128,32], index: 2, kind: input, shape index: {}]
  %s3 = inlined_call_operand.vmem [shape: bf16[32,32], index: 3, kind: input, shape index: {}]
  %s4 = inlined_call_operand.vmem [shape: bf16[32,32], index: 4, kind: input, shape index: {}]
  %s5 = inlined_call_operand.vmem [shape: bf16[32,32], index: 5, kind: input, shape index: {}]
  %s6 = inlined_call_operand.vmem [shape: bf16[32,128], index: 6, kind: input, shape index: {}]
  %s7 = inlined_call_operand.vmem [shape: f32[1,128], index: 7, kind: input, shape index: {}]
  %s8 = inlined_call_operand.hbm [shape: f32[16,8,128], index: 8, kind: output, shape index: {}]
  %s9 = sld [smem:[#allocation0]]
  $region65: #{tpu_custom_call.1} parent=0
    _
  %s11 = ssub.s32 1, %s9
  %s12 = scalar_select 0, %s11, %s9
  $region1: #{tpu_custom_call.1} parent=0
    #allocation2 [shape = 'u8[65536]{0}', space=vmem, size = 0x10000, scoped, tag = 'output window, operand 0']
    #allocation3 [shape = 's32[2]{0}', space=sflag, size = 0x8, scoped, tag = 'scoped memory for tpu_custom_call.1']
    %13 = vsyncpa [#allocation3], 0
    %s14 = scalar_lea.sflag [#allocation3], 1
    %15 = vsyncpa %s14, 0
    loop: start=0, step=1, limit=4
    $region2: #{tpu_custom_call.1} parent=1 // loop_pre_header
      _
    $region3: #{tpu_custom_call.1} parent=1 // loop_header
      %s17 = sphi 0, %s21
      %p18 = scmp.ge.s32.totalorder %s17, 4
      %s27 = sphi 0, %s29
      %s30 = sphi 0, %s27
      %s31 = sphi 0, %s30
      %s47 = sphi 0, %s31
      %s51 = sphi 0, %s51
      %s53 = sphi 0, %s51
      %s54 = sphi 0, %s53
      %s68 = sphi 0, %s54
      %s72 = sphi 0, %s72
      %s74 = sphi 0, %s72
      %s75 = sphi 0, %s74
      %s89 = sphi 0, %s75
      %s93 = sphi 0, %s93
      %s95 = sphi 0, %s93
      %s96 = sphi 0, %s95
      %s110 = sphi 0, %s96
      %s114 = sphi 0, %s114
      %s116 = sphi 0, %s114
      %s117 = sphi 0, %s116
      %s131 = sphi 0, %s117
      %s135 = sphi 0, %s135
      %s137 = sphi 0, %s135
      %s138 = sphi 0, %s137
      %s152 = sphi 0, %s138
      %s156 = sphi 0, %s156
      %s158 = sphi 0, %s156
      %s159 = sphi 0, %s158
      %s173 = sphi 0, %s159
      %s177 = sphi 0, %s177
      %s179 = sphi 0, %s177
      %s180 = sphi 0, %s179
      %s194 = sphi 0, %s180
      %s200 = sphi 0, %s202
      %s203 = sphi 0, %s200
      %s204 = sphi 0, %s203
      %s220 = sphi 0, %s204
    $region4: #{tpu_custom_call.1} parent=1 // loop_header_branch
      %20 = sbr.rel (%p18) target = $region8
    $region5: #{tpu_custom_call.1} parent=1 // loop_body
      %s22 = ssub.s32 %s17, 1
      %s23 = ssub.s32 %s17, 2
      %s24 = sadd.s32 %s17, 1
      %s25 = ssub.s32 %s17, %s24
      %p26 = scmp.eq.s32.totalorder %s25, 0
      %s28 = sadd.s32 %s27, 1
      %s29 = scalar_select %p26, %s27, %s28
      %p32 = pneg %p26
      %p33 = scmp.eq.s32.totalorder %s17, 1
      %p34 = por %p32, %p33
      %p35 = scmp.ne.s32.totalorder %s27, %s30
      %p36 = scmp.eq.s32.totalorder %s17, 0
      %p37 = por %p35, %p36
      %p38 = scmp.ne.s32.totalorder %s27, %s30
      %p39 = scmp.eq.s32.totalorder %s22, 1
      %p40 = por %p38, %p39
      %p41 = scmp.ne.s32.totalorder %s30, %s31
      %p42 = scmp.eq.s32.totalorder %s22, 0
      %p43 = por %p41, %p42
      %p44 = scmp.ne.s32.totalorder %s30, %s31
      %p45 = scmp.eq.s32.totalorder %s23, 1
      %p46 = por %p44, %p45
      %p48 = scmp.ne.s32.totalorder %s31, %s47
      %p49 = scmp.eq.s32.totalorder %s23, 0
      %p50 = por %p48, %p49
      %s52 = sadd.s32 %s51, 1
      %p55 = scmp.eq.s32.totalorder %s17, 1
      %p56 = scmp.ne.s32.totalorder %s51, %s53
      %p57 = scmp.eq.s32.totalorder %s17, 0
      %p58 = por %p56, %p57
      %p59 = scmp.ne.s32.totalorder %s51, %s53
      %p60 = scmp.eq.s32.totalorder %s22, 1
      %p61 = por %p59, %p60
      %p62 = scmp.ne.s32.totalorder %s53, %s54
      %p63 = scmp.eq.s32.totalorder %s22, 0
      %p64 = por %p62, %p63
      %p65 = scmp.ne.s32.totalorder %s53, %s54
      %p66 = scmp.eq.s32.totalorder %s23, 1
      %p67 = por %p65, %p66
      %p69 = scmp.ne.s32.totalorder %s54, %s68
      %p70 = scmp.eq.s32.totalorder %s23, 0
      %p71 = por %p69, %p70
      %s73 = sadd.s32 %s72, 1
      %p76 = scmp.eq.s32.totalorder %s17, 1
      %p77 = scmp.ne.s32.totalorder %s72, %s74
      %p78 = scmp.eq.s32.totalorder %s17, 0
      %p79 = por %p77, %p78
      %p80 = scmp.ne.s32.totalorder %s72, %s74
      %p81 = scmp.eq.s32.totalorder %s22, 1
      %p82 = por %p80, %p81
      %p83 = scmp.ne.s32.totalorder %s74, %s75
      %p84 = scmp.eq.s32.totalorder %s22, 0
      %p85 = por %p83, %p84
      %p86 = scmp.ne.s32.totalorder %s74, %s75
      %p87 = scmp.eq.s32.totalorder %s23, 1
      %p88 = por %p86, %p87
      %p90 = scmp.ne.s32.totalorder %s75, %s89
      %p91 = scmp.eq.s32.totalorder %s23, 0
      %p92 = por %p90, %p91
      %s94 = sadd.s32 %s93, 1
      %p97 = scmp.eq.s32.totalorder %s17, 1
      %p98 = scmp.ne.s32.totalorder %s93, %s95
      %p99 = scmp.eq.s32.totalorder %s17, 0
      %p100 = por %p98, %p99
      %p101 = scmp.ne.s32.totalorder %s93, %s95
      %p102 = scmp.eq.s32.totalorder %s22, 1
      %p103 = por %p101, %p102
      %p104 = scmp.ne.s32.totalorder %s95, %s96
      %p105 = scmp.eq.s32.totalorder %s22, 0
      %p106 = por %p104, %p105
      %p107 = scmp.ne.s32.totalorder %s95, %s96
      %p108 = scmp.eq.s32.totalorder %s23, 1
      %p109 = por %p107, %p108
      %p111 = scmp.ne.s32.totalorder %s96, %s110
      %p112 = scmp.eq.s32.totalorder %s23, 0
      %p113 = por %p111, %p112
      %s115 = sadd.s32 %s114, 1
      %p118 = scmp.eq.s32.totalorder %s17, 1
      %p119 = scmp.ne.s32.totalorder %s114, %s116
      %p120 = scmp.eq.s32.totalorder %s17, 0
      %p121 = por %p119, %p120
      %p122 = scmp.ne.s32.totalorder %s114, %s116
      %p123 = scmp.eq.s32.totalorder %s22, 1
      %p124 = por %p122, %p123
      %p125 = scmp.ne.s32.totalorder %s116, %s117
      %p126 = scmp.eq.s32.totalorder %s22, 0
      %p127 = por %p125, %p126
      %p128 = scmp.ne.s32.totalorder %s116, %s117
      %p129 = scmp.eq.s32.totalorder %s23, 1
      %p130 = por %p128, %p129
      %p132 = scmp.ne.s32.totalorder %s117, %s131
      %p133 = scmp.eq.s32.totalorder %s23, 0
      %p134 = por %p132, %p133
      %s136 = sadd.s32 %s135, 1
      %p139 = scmp.eq.s32.totalorder %s17, 1
      %p140 = scmp.ne.s32.totalorder %s135, %s137
      %p141 = scmp.eq.s32.totalorder %s17, 0
      %p142 = por %p140, %p141
      %p143 = scmp.ne.s32.totalorder %s135, %s137
      %p144 = scmp.eq.s32.totalorder %s22, 1
      %p145 = por %p143, %p144
      %p146 = scmp.ne.s32.totalorder %s137, %s138
      %p147 = scmp.eq.s32.totalorder %s22, 0
      %p148 = por %p146, %p147
      %p149 = scmp.ne.s32.totalorder %s137, %s138
      %p150 = scmp.eq.s32.totalorder %s23, 1
      %p151 = por %p149, %p150
      %p153 = scmp.ne.s32.totalorder %s138, %s152
      %p154 = scmp.eq.s32.totalorder %s23, 0
      %p155 = por %p153, %p154
      %s157 = sadd.s32 %s156, 1
      %p160 = scmp.eq.s32.totalorder %s17, 1
      %p161 = scmp.ne.s32.totalorder %s156, %s158
      %p162 = scmp.eq.s32.totalorder %s17, 0
      %p163 = por %p161, %p162
      %p164 = scmp.ne.s32.totalorder %s156, %s158
      %p165 = scmp.eq.s32.totalorder %s22, 1
      %p166 = por %p164, %p165
      %p167 = scmp.ne.s32.totalorder %s158, %s159
      %p168 = scmp.eq.s32.totalorder %s22, 0
      %p169 = por %p167, %p168
      %p170 = scmp.ne.s32.totalorder %s158, %s159
      %p171 = scmp.eq.s32.totalorder %s23, 1
      %p172 = por %p170, %p171
      %p174 = scmp.ne.s32.totalorder %s159, %s173
      %p175 = scmp.eq.s32.totalorder %s23, 0
      %p176 = por %p174, %p175
      %s178 = sadd.s32 %s177, 1
      %p181 = scmp.eq.s32.totalorder %s17, 1
      %p182 = scmp.ne.s32.totalorder %s177, %s179
      %p183 = scmp.eq.s32.totalorder %s17, 0
      %p184 = por %p182, %p183
      %p185 = scmp.ne.s32.totalorder %s177, %s179
      %p186 = scmp.eq.s32.totalorder %s22, 1
      %p187 = por %p185, %p186
      %p188 = scmp.ne.s32.totalorder %s179, %s180
      %p189 = scmp.eq.s32.totalorder %s22, 0
      %p190 = por %p188, %p189
      %p191 = scmp.ne.s32.totalorder %s179, %s180
      %p192 = scmp.eq.s32.totalorder %s23, 1
      %p193 = por %p191, %p192
      %p195 = scmp.ne.s32.totalorder %s180, %s194
      %p196 = scmp.eq.s32.totalorder %s23, 0
      %p197 = por %p195, %p196
      %s198 = ssub.s32 %s17, %s24
      %p199 = scmp.eq.s32.totalorder %s198, 0
      %s201 = sadd.s32 %s200, 1
      %s202 = scalar_select %p199, %s200, %s201
      %p205 = pneg %p199
      %p206 = scmp.eq.s32.totalorder %s17, 1
      %p207 = por %p205, %p206
      %p208 = scmp.ne.s32.totalorder %s200, %s203
      %p209 = scmp.eq.s32.totalorder %s17, 0
      %p210 = por %p208, %p209
      %p211 = scmp.ne.s32.totalorder %s200, %s203
      %p212 = scmp.eq.s32.totalorder %s22, 1
      %p213 = por %p211, %p212
      %p214 = scmp.ne.s32.totalorder %s203, %s204
      %p215 = scmp.eq.s32.totalorder %s22, 0
      %p216 = por %p214, %p215
      %p217 = scmp.ne.s32.totalorder %s203, %s204
      %p218 = scmp.eq.s32.totalorder %s23, 1
      %p219 = por %p217, %p218
      %p221 = scmp.ne.s32.totalorder %s204, %s220
      %p222 = scmp.eq.s32.totalorder %s23, 0
      %p223 = por %p221, %p222
      %p224 = scmp.le.s32.totalorder 1, %s17
      %p225 = scmp.lt.s32.totalorder %s17, 3
      %p226 = pnand %p224, %p225
      %p227 = pneg %p226
      // Predicated region
      $region9: #{tpu_custom_call.1} parent=5 // pred_check
        _
      $region10: #{tpu_custom_call.1} parent=5 // pred_check_branch
        %229 = sbr.rel (%p226) target = $region12
      $region11: #{tpu_custom_call.1} parent=5 // pred_region
        %s230 = ssub.s32 %s17, 1
        // Predicated region
        $region13: #{tpu_custom_call.1} parent=11 // pred_check
          %p231 = pneg %p64
        $region14: #{tpu_custom_call.1} parent=11 // pred_check_branch
          %233 = sbr.rel (%p231) target = $region16
        $region15: #{tpu_custom_call.1} parent=11 // pred_region
          _
        $region16: #{tpu_custom_call.1} parent=11 // pred_fallthru
          _
        // Predicated region
        $region17: #{tpu_custom_call.1} parent=11 // pred_check
          %p234 = pneg %p85
        $region18: #{tpu_custom_call.1} parent=11 // pred_check_branch
          %236 = sbr.rel (%p234) target = $region20
        $region19: #{tpu_custom_call.1} parent=11 // pred_region
          _
        $region20: #{tpu_custom_call.1} parent=11 // pred_fallthru
          _
        // Predicated region
        $region21: #{tpu_custom_call.1} parent=11 // pred_check
          %p237 = pneg %p106
        $region22: #{tpu_custom_call.1} parent=11 // pred_check_branch
          %239 = sbr.rel (%p237) target = $region24
        $region23: #{tpu_custom_call.1} parent=11 // pred_region
          _
        $region24: #{tpu_custom_call.1} parent=11 // pred_fallthru
          _
        // Predicated region
        $region25: #{tpu_custom_call.1} parent=11 // pred_check
          %p240 = pneg %p127
        $region26: #{tpu_custom_call.1} parent=11 // pred_check_branch
          %242 = sbr.rel (%p240) target = $region28
        $region27: #{tpu_custom_call.1} parent=11 // pred_region
          _
        $region28: #{tpu_custom_call.1} parent=11 // pred_fallthru
          _
        // Predicated region
        $region29: #{tpu_custom_call.1} parent=11 // pred_check
          %p243 = pneg %p148
        $region30: #{tpu_custom_call.1} parent=11 // pred_check_branch
          %245 = sbr.rel (%p243) target = $region32
        $region31: #{tpu_custom_call.1} parent=11 // pred_region
          _
        $region32: #{tpu_custom_call.1} parent=11 // pred_fallthru
          _
        // Predicated region
        $region33: #{tpu_custom_call.1} parent=11 // pred_check
          %p246 = pneg %p169
        $region34: #{tpu_custom_call.1} parent=11 // pred_check_branch
          %248 = sbr.rel (%p246) target = $region36
        $region35: #{tpu_custom_call.1} parent=11 // pred_region
          _
        $region36: #{tpu_custom_call.1} parent=11 // pred_fallthru
          _
        // Predicated region
        $region37: #{tpu_custom_call.1} parent=11 // pred_check
          %p249 = pneg %p190
        $region38: #{tpu_custom_call.1} parent=11 // pred_check_branch
          %251 = sbr.rel (%p249) target = $region40
        $region39: #{tpu_custom_call.1} parent=11 // pred_region
          _
        $region40: #{tpu_custom_call.1} parent=11 // pred_fallthru
          _
      $region12: #{tpu_custom_call.1} parent=5 // pred_fallthru
        _
      %p252 = scmp.lt.s32.totalorder %s17, 2
      // Predicated region
      $region41: #{tpu_custom_call.1} parent=5 // pred_check
        %p253 = pneg %p252
      $region42: #{tpu_custom_call.1} parent=5 // pred_check_branch
        %255 = sbr.rel (%p253) target = $region44
      $region43: #{tpu_custom_call.1} parent=5 // pred_region
        // Predicated region
        $region45: #{tpu_custom_call.1} parent=43 // pred_check
          %p256 = pneg %p37
        $region46: #{tpu_custom_call.1} parent=43 // pred_check_branch
          %258 = sbr.rel (%p256) target = $region48
        $region47: #{tpu_custom_call.1} parent=43 // pred_region
          %s259 = smul.u32 8, %s17
          %p260 = scmp.lt.s32.totalorder %s259, 15
          %s261 = scalar_select %p260, %s259, 15
          %s262 = smul.addr %s261, 8
          %s263 = scalar_lea.vmem %s0, %s262
          %s264 = smul.u32 8, %s17
        $region48: #{tpu_custom_call.1} parent=43 // pred_fallthru
          _
      $region44: #{tpu_custom_call.1} parent=5 // pred_fallthru
        _
      %p265 = scmp.le.s32.totalorder 1, %s17
      %p266 = scmp.lt.s32.totalorder %s17, 3
      %p267 = pnand %p265, %p266
      %p268 = pneg %p267
      // Predicated region
      $region49: #{tpu_custom_call.1} parent=5 // pred_check
        _
      $region50: #{tpu_custom_call.1} parent=5 // pred_check_branch
        %270 = sbr.rel (%p267) target = $region52
      $region51: #{tpu_custom_call.1} parent=5 // pred_region
        %s271 = ssub.s32 %s17, 1
        %s272 = smul.u32 8, %s22
        %p273 = scmp.lt.s32.totalorder %s272, 15
        %s274 = scalar_select %p273, %s272, 15
        %s275 = smul.addr %s274, 8
        %s276 = scalar_lea.vmem %s0, %s275
        %p277 = pneg %p43
        %p278 = pneg %p40
        %p279 = pneg %p64
        %p280 = pneg %p61
        %p281 = pneg %p85
        %p282 = pneg %p82
        %p283 = pneg %p106
        %p284 = pneg %p103
        %p285 = pneg %p127
        %p286 = pneg %p124
        %p287 = pneg %p148
        %p288 = pneg %p145
        %p289 = pneg %p169
        %p290 = pneg %p166
        %p291 = pneg %p190
        %p292 = pneg %p187
        %p293 = pneg %p216
        %p294 = pneg %p213
        %s295 = sand.u32 %s203, 1
        %s296 = scalar_lea.sflag [#allocation3], %s295
        %s297 = sand.u32 %s203, 1
        %s298 = smul.addr %s297, 64
        %s299 = scalar_lea.vmem [#allocation2], %s298
        %s300 = smul.u32 8, %s22
        %p301 = scmp.lt.s32.totalorder %s300, 15
        %s302 = scalar_select %p301, %s300, 15
        %s303 = smul.addr %s302, 8
        %s304 = scalar_lea.vmem %s0, %s303
        %s305 = smul.u32 8, %s22
        %s306 = smul.u32 8, %s22
        %v308 = vld [vmem:[%s304] sm:$0xff]
        %v309 = vld [vmem:[%s304 + $0x8] sm:$0xff]
        %v310 = vld [vmem:[%s304 + $0x10] sm:$0xff]
        %v311 = vld [vmem:[%s304 + $0x18] sm:$0xff]
        %v312 = vld [vmem:[%s304 + $0x20] sm:$0xff]
        %v313 = vld [vmem:[%s304 + $0x28] sm:$0xff]
        %v314 = vld [vmem:[%s304 + $0x30] sm:$0xff]
        %v315 = vld [vmem:[%s304 + $0x38] sm:$0xff]
        %v316 = vlaneseq
        %v317 = vand.u32 %v316, 127
        %318 = vset.pattern.permute.xlu0 0
        %319 = vperm.xlu0 %318, %v308
        %v320 = vpop.permute.xlu0 %319
        %321 = vset.pattern.permute.xlu0 0
        %322 = vperm.xlu0 %321, %v309
        %v323 = vpop.permute.xlu0 %322
        %324 = vset.pattern.permute.xlu0 0
        %325 = vperm.xlu0 %324, %v310
        %v326 = vpop.permute.xlu0 %325
        %327 = vset.pattern.permute.xlu0 0
        %328 = vperm.xlu0 %327, %v311
        %v329 = vpop.permute.xlu0 %328
        %330 = vset.pattern.permute.xlu0 0
        %331 = vperm.xlu0 %330, %v312
        %v332 = vpop.permute.xlu0 %331
        %333 = vset.pattern.permute.xlu0 0
        %334 = vperm.xlu0 %333, %v313
        %v335 = vpop.permute.xlu0 %334
        %336 = vset.pattern.permute.xlu0 0
        %337 = vperm.xlu0 %336, %v314
        %v338 = vpop.permute.xlu0 %337
        %339 = vset.pattern.permute.xlu0 0
        %340 = vperm.xlu0 %339, %v315
        %v341 = vpop.permute.xlu0 %340
        %vm342 = vcmp.eq.s32.totalorder %v317, %v320
        %vm343 = vcmp.eq.s32.totalorder %v317, %v323
        %vm344 = vcmp.eq.s32.totalorder %v317, %v326
        %vm345 = vcmp.eq.s32.totalorder %v317, %v329
        %vm346 = vcmp.eq.s32.totalorder %v317, %v332
        %vm347 = vcmp.eq.s32.totalorder %v317, %v335
        %vm348 = vcmp.eq.s32.totalorder %v317, %v338
        %vm349 = vcmp.eq.s32.totalorder %v317, %v341
        %v350 = vsel %vm342, 1, 0
        %v351 = vsel %vm343, 1, 0
        %v352 = vsel %vm344, 1, 0
        %v353 = vsel %vm345, 1, 0
        %v354 = vsel %vm346, 1, 0
        %v355 = vsel %vm347, 1, 0
        %v356 = vsel %vm348, 1, 0
        %v357 = vsel %vm349, 1, 0
        %v358 = vcvt.s32.f32 %v350
        %v359 = vcvt.s32.f32 %v351
        %v360 = vcvt.s32.f32 %v352
        %v361 = vcvt.s32.f32 %v353
        %v362 = vcvt.s32.f32 %v354
        %v363 = vcvt.s32.f32 %v355
        %v364 = vcvt.s32.f32 %v356
        %v365 = vcvt.s32.f32 %v357
        %v366 = vpack.c.bf16 %v358, %v358
        %v367 = vpack.c.bf16 %v359, %v359
        %v368 = vpack.c.bf16 %v360, %v360
        %v369 = vpack.c.bf16 %v361, %v361
        %v370 = vpack.c.bf16 %v362, %v362
        %v371 = vpack.c.bf16 %v363, %v363
        %v372 = vpack.c.bf16 %v364, %v364
        %v373 = vpack.c.bf16 %v365, %v365
        %v374 = vld [vmem:[%s2] sm:$0xf]
        %v375 = vld [vmem:[%s2 + $0x4] sm:$0xf]
        %v376 = vld [vmem:[%s2 + $0x8] sm:$0xf]
        %v377 = vld [vmem:[%s2 + $0xc] sm:$0xf]
        %v378 = vld [vmem:[%s2 + $0x10] sm:$0xf]
        %v379 = vld [vmem:[%s2 + $0x14] sm:$0xf]
        %v380 = vld [vmem:[%s2 + $0x18] sm:$0xf]
        %v381 = vld [vmem:[%s2 + $0x1c] sm:$0xf]
        %v382 = vld [vmem:[%s2 + $0x20] sm:$0xf]
        %v383 = vld [vmem:[%s2 + $0x24] sm:$0xf]
        %v384 = vld [vmem:[%s2 + $0x28] sm:$0xf]
        %v385 = vld [vmem:[%s2 + $0x2c] sm:$0xf]
        %v386 = vld [vmem:[%s2 + $0x30] sm:$0xf]
        %v387 = vld [vmem:[%s2 + $0x34] sm:$0xf]
        %v388 = vld [vmem:[%s2 + $0x38] sm:$0xf]
        %v389 = vld [vmem:[%s2 + $0x3c] sm:$0xf]
        %v398 = vunpack.c.l.b16 %v366
        %v399 = vunpack.c.l.b16 %v367
        %v400 = vunpack.c.l.b16 %v368
        %v401 = vunpack.c.l.b16 %v369
        %v402 = vunpack.c.l.b16 %v370
        %v403 = vunpack.c.l.b16 %v371
        %v404 = vunpack.c.l.b16 %v372
        %v405 = vunpack.c.l.b16 %v373
        %v406 = vpack.c.b16 %v399, %v398
        %v407 = vpack.c.b16 %v401, %v400
        %v408 = vpack.c.b16 %v403, %v402
        %v409 = vpack.c.b16 %v405, %v404
        %v430 = vunpack.c.l.b16 %v374
        %v431 = vunpack.c.l.b16 %v375
        %v432 = vunpack.c.l.b16 %v376
        %v433 = vunpack.c.l.b16 %v377
        %v434 = vunpack.c.l.b16 %v378
        %v435 = vunpack.c.l.b16 %v379
        %v436 = vunpack.c.l.b16 %v380
        %v437 = vunpack.c.l.b16 %v381
        %v438 = vunpack.c.l.b16 %v382
        %v439 = vunpack.c.l.b16 %v383
        %v440 = vunpack.c.l.b16 %v384
        %v441 = vunpack.c.l.b16 %v385
        %v442 = vunpack.c.l.b16 %v386
        %v443 = vunpack.c.l.b16 %v387
        %v444 = vunpack.c.l.b16 %v388
        %v445 = vunpack.c.l.b16 %v389
        %v446 = vpack.c.b16 %v431, %v430
        %v447 = vpack.c.b16 %v433, %v432
        %v448 = vpack.c.b16 %v435, %v434
        %v449 = vpack.c.b16 %v437, %v436
        %v450 = vpack.c.b16 %v439, %v438
        %v451 = vpack.c.b16 %v441, %v440
        %v452 = vpack.c.b16 %v443, %v442
        %v453 = vpack.c.b16 %v445, %v444
        %462 = vmatprep.subr.bf16.mxu0 0
        %463 = vmatpush1.bf16.msra.mxu0 %v446
        %464 = vmatprep.subr.bf16.mxu0 0
        %465 = vmatpush1.bf16.msra.mxu0 %v447
        %466 = vmatprep.subr.bf16.mxu0 0
        %467 = vmatpush1.bf16.msra.mxu0 %v448
        %468 = vmatprep.subr.bf16.mxu0 0
        %469 = vmatpush1.bf16.msra.mxu0 %v449
        %470 = vmatprep.subr.bf16.mxu0 0
        %471 = vmatpush1.bf16.msra.mxu0 %v450
        %472 = vmatprep.subr.bf16.mxu0 0
        %473 = vmatpush1.bf16.msra.mxu0 %v451
        %474 = vmatprep.subr.bf16.mxu0 0
        %475 = vmatpush1.bf16.msra.mxu0 %v452
        %476 = vmatprep.subr.bf16.mxu0 0
        %477 = vmatpush1.bf16.msra.mxu0 %v453
        %478 = vmatprep.subr.bf16.mxu0 0
        %479 = vmatpush1.bf16.msra.mxu0 0
        %480 = vmatprep.subr.bf16.mxu0 0
        %481 = vmatpush1.bf16.msra.mxu0 0
        %482 = vmatprep.subr.bf16.mxu0 0
        %483 = vmatpush1.bf16.msra.mxu0 0
        %484 = vmatprep.subr.bf16.mxu0 0
        %485 = vmatpush1.bf16.msra.mxu0 0
        %486 = vmatprep.subr.bf16.mxu0 0
        %487 = vmatpush1.bf16.msra.mxu0 0
        %488 = vmatprep.subr.bf16.mxu0 0
        %489 = vmatpush1.bf16.msra.mxu0 0
        %490 = vmatprep.subr.bf16.mxu0 0
        %491 = vmatpush1.bf16.msra.mxu0 0
        %492 = vmatprep.subr.bf16.mxu0 0
        %493 = vmatpush1.bf16.msra.mxu0 0
        %494 = vmatprep.mubr.bf16.mxu0 0
        %495 = vmatmul.mubr.bf16.gmra.mrb[0].mxu0 %v406
        %v496 = vpop.f32.mrb[0].mxu0
        %v497 = vadd.f32 0.0, %v496
        %v498 = vpop.f32.mrb[0].mxu0
        %v499 = vpop.f32.mrb[0].mxu0
        %v500 = vadd.f32 0.0, %v499
        %v501 = vpop.f32.mrb[0].mxu0
        %502 = vmatprep.mubr.bf16.mxu0 0
        %503 = vmatmul.mubr.bf16.gmra.mrb[0].mxu0 %v407
        %v504 = vpop.f32.mrb[0].mxu0
        %v505 = vadd.f32 0.0, %v504
        %v506 = vpop.f32.mrb[0].mxu0
        %v507 = vpop.f32.mrb[0].mxu0
        %v508 = vadd.f32 0.0, %v507
        %v509 = vpop.f32.mrb[0].mxu0
        %510 = vmatprep.mubr.bf16.mxu0 0
        %511 = vmatmul.mubr.bf16.gmra.mrb[0].mxu0 %v408
        %v512 = vpop.f32.mrb[0].mxu0
        %v513 = vadd.f32 0.0, %v512
        %v514 = vpop.f32.mrb[0].mxu0
        %v515 = vpop.f32.mrb[0].mxu0
        %v516 = vadd.f32 0.0, %v515
        %v517 = vpop.f32.mrb[0].mxu0
        %518 = vmatprep.mubr.bf16.mxu0 0
        %519 = vmatmul.mubr.bf16.gmra.mrb[0].mxu0 %v409
        %v520 = vpop.f32.mrb[0].mxu0
        %v521 = vadd.f32 0.0, %v520
        %v522 = vpop.f32.mrb[0].mxu0
        %v523 = vpop.f32.mrb[0].mxu0
        %v524 = vadd.f32 0.0, %v523
        %v525 = vpop.f32.mrb[0].mxu0
        %526 = vdwg.mxu0
        %v527 = vld [vmem:[%s1] sm:$0xff]
        %v528 = vadd.f32 %v497, %v527
        %v529 = vadd.f32 %v500, %v527
        %v530 = vadd.f32 %v505, %v527
        %v531 = vadd.f32 %v508, %v527
        %v532 = vadd.f32 %v513, %v527
        %v533 = vadd.f32 %v516, %v527
        %v534 = vadd.f32 %v521, %v527
        %v535 = vadd.f32 %v524, %v527
        %v536 = vpack.c.bf16 %v529, %v528
        %v537 = vpack.c.bf16 %v531, %v530
        %v538 = vpack.c.bf16 %v533, %v532
        %v539 = vpack.c.bf16 %v535, %v534
        %v540 = vld [vmem:[%s4] sm:$0xf]
        %v541 = vld [vmem:[%s4 + $0x4] sm:$0xf]
        %v542 = vld [vmem:[%s4 + $0x8] sm:$0xf]
        %v543 = vld [vmem:[%s4 + $0xc] sm:$0xf]
        %v548 = vunpack.c.l.b16 %v540
        %v549 = vunpack.c.l.b16 %v541
        %v550 = vunpack.c.l.b16 %v542
        %v551 = vunpack.c.l.b16 %v543
        %v552 = vpack.c.b16 %v549, %v548
        %v553 = vpack.c.b16 %v551, %v550
        %vm556 = vcmask 261120
        %v558 = vsel %vm556, %v536, 0
        %v561 = vsel %vm556, %v537, 0
        %v564 = vsel %vm556, %v538, 0
        %v567 = vsel %vm556, %v539, 0
        %569 = vmatprep.subr.bf16.mxu0 0
        %570 = vmatpush1.bf16.msra.mxu0 %v552
        %571 = vmatprep.subr.bf16.mxu0 0
        %572 = vmatpush1.bf16.msra.mxu0 %v553
        %573 = vmatprep.subr.bf16.mxu0 0
        %574 = vmatpush1.bf16.msra.mxu0 0
        %575 = vmatprep.subr.bf16.mxu0 0
        %576 = vmatpush1.bf16.msra.mxu0 0
        %577 = vmatprep.subr.bf16.mxu0 0
        %578 = vmatpush1.bf16.msra.mxu0 0
        %579 = vmatprep.subr.bf16.mxu0 0
        %580 = vmatpush1.bf16.msra.mxu0 0
        %581 = vmatprep.subr.bf16.mxu0 0
        %582 = vmatpush1.bf16.msra.mxu0 0
        %583 = vmatprep.subr.bf16.mxu0 0
        %584 = vmatpush1.bf16.msra.mxu0 0
        %585 = vmatprep.subr.bf16.mxu0 0
        %586 = vmatpush1.bf16.msra.mxu0 0
        %587 = vmatprep.subr.bf16.mxu0 0
        %588 = vmatpush1.bf16.msra.mxu0 0
        %589 = vmatprep.subr.bf16.mxu0 0
        %590 = vmatpush1.bf16.msra.mxu0 0
        %591 = vmatprep.subr.bf16.mxu0 0
        %592 = vmatpush1.bf16.msra.mxu0 0
        %593 = vmatprep.subr.bf16.mxu0 0
        %594 = vmatpush1.bf16.msra.mxu0 0
        %595 = vmatprep.subr.bf16.mxu0 0
        %596 = vmatpush1.bf16.msra.mxu0 0
        %597 = vmatprep.subr.bf16.mxu0 0
        %598 = vmatpush1.bf16.msra.mxu0 0
        %599 = vmatprep.subr.bf16.mxu0 0
        %600 = vmatpush1.bf16.msra.mxu0 0
        %601 = vmatprep.mubr.bf16.mxu0 0
        %602 = vmatmul.mubr.bf16.gmra.mrb[0].mxu0 %v558
        %v603 = vpop.f32.mrb[0].mxu0
        %v604 = vadd.f32 0.0, %v603
        %v605 = vpop.f32.mrb[0].mxu0
        %v606 = vpop.f32.mrb[0].mxu0
        %v607 = vadd.f32 0.0, %v606
        %v608 = vpop.f32.mrb[0].mxu0
        %609 = vmatprep.mubr.bf16.mxu0 0
        %610 = vmatmul.mubr.bf16.gmra.mrb[0].mxu0 %v561
        %v611 = vpop.f32.mrb[0].mxu0
        %v612 = vadd.f32 0.0, %v611
        %v613 = vpop.f32.mrb[0].mxu0
        %v614 = vpop.f32.mrb[0].mxu0
        %v615 = vadd.f32 0.0, %v614
        %v616 = vpop.f32.mrb[0].mxu0
        %617 = vmatprep.mubr.bf16.mxu0 0
        %618 = vmatmul.mubr.bf16.gmra.mrb[0].mxu0 %v564
        %v619 = vpop.f32.mrb[0].mxu0
        %v620 = vadd.f32 0.0, %v619
        %v621 = vpop.f32.mrb[0].mxu0
        %v622 = vpop.f32.mrb[0].mxu0
        %v623 = vadd.f32 0.0, %v622
        %v624 = vpop.f32.mrb[0].mxu0
        %625 = vmatprep.mubr.bf16.mxu0 0
        %626 = vmatmul.mubr.bf16.gmra.mrb[0].mxu0 %v567
        %v627 = vpop.f32.mrb[0].mxu0
        %v628 = vadd.f32 0.0, %v627
        %v629 = vpop.f32.mrb[0].mxu0
        %v630 = vpop.f32.mrb[0].mxu0
        %v631 = vadd.f32 0.0, %v630
        %v632 = vpop.f32.mrb[0].mxu0
        %633 = vdwg.mxu0
        %v634 = vld [vmem:[%s3] sm:$0xf]
        %v635 = vld [vmem:[%s3 + $0x4] sm:$0xf]
        %v636 = vld [vmem:[%s3 + $0x8] sm:$0xf]
        %v637 = vld [vmem:[%s3 + $0xc] sm:$0xf]
        %v642 = vunpack.c.l.b16 %v634
        %v643 = vunpack.c.l.b16 %v635
        %v644 = vunpack.c.l.b16 %v636
        %v645 = vunpack.c.l.b16 %v637
        %v646 = vpack.c.b16 %v643, %v642
        %v647 = vpack.c.b16 %v645, %v644
        %650 = vmatprep.subr.bf16.mxu0 0
        %651 = vmatpush1.bf16.msra.mxu0 %v646
        %652 = vmatprep.subr.bf16.mxu0 0
        %653 = vmatpush1.bf16.msra.mxu0 %v647
        %654 = vmatprep.subr.bf16.mxu0 0
        %655 = vmatpush1.bf16.msra.mxu0 0
        %656 = vmatprep.subr.bf16.mxu0 0
        %657 = vmatpush1.bf16.msra.mxu0 0
        %658 = vmatprep.subr.bf16.mxu0 0
        %659 = vmatpush1.bf16.msra.mxu0 0
        %660 = vmatprep.subr.bf16.mxu0 0
        %661 = vmatpush1.bf16.msra.mxu0 0
        %662 = vmatprep.subr.bf16.mxu0 0
        %663 = vmatpush1.bf16.msra.mxu0 0
        %664 = vmatprep.subr.bf16.mxu0 0
        %665 = vmatpush1.bf16.msra.mxu0 0
        %666 = vmatprep.subr.bf16.mxu0 0
        %667 = vmatpush1.bf16.msra.mxu0 0
        %668 = vmatprep.subr.bf16.mxu0 0
        %669 = vmatpush1.bf16.msra.mxu0 0
        %670 = vmatprep.subr.bf16.mxu0 0
        %671 = vmatpush1.bf16.msra.mxu0 0
        %672 = vmatprep.subr.bf16.mxu0 0
        %673 = vmatpush1.bf16.msra.mxu0 0
        %674 = vmatprep.subr.bf16.mxu0 0
        %675 = vmatpush1.bf16.msra.mxu0 0
        %676 = vmatprep.subr.bf16.mxu0 0
        %677 = vmatpush1.bf16.msra.mxu0 0
        %678 = vmatprep.subr.bf16.mxu0 0
        %679 = vmatpush1.bf16.msra.mxu0 0
        %680 = vmatprep.subr.bf16.mxu0 0
        %681 = vmatpush1.bf16.msra.mxu0 0
        %682 = vmatprep.mubr.bf16.mxu0 0
        %683 = vmatmul.mubr.bf16.gmra.mrb[0].mxu0 %v558
        %v684 = vpop.f32.mrb[0].mxu0
        %v685 = vadd.f32 0.0, %v684
        %v686 = vpop.f32.mrb[0].mxu0
        %v687 = vpop.f32.mrb[0].mxu0
        %v688 = vadd.f32 0.0, %v687
        %v689 = vpop.f32.mrb[0].mxu0
        %690 = vmatprep.mubr.bf16.mxu0 0
        %691 = vmatmul.mubr.bf16.gmra.mrb[0].mxu0 %v561
        %v692 = vpop.f32.mrb[0].mxu0
        %v693 = vadd.f32 0.0, %v692
        %v694 = vpop.f32.mrb[0].mxu0
        %v695 = vpop.f32.mrb[0].mxu0
        %v696 = vadd.f32 0.0, %v695
        %v697 = vpop.f32.mrb[0].mxu0
        %698 = vmatprep.mubr.bf16.mxu0 0
        %699 = vmatmul.mubr.bf16.gmra.mrb[0].mxu0 %v564
        %v700 = vpop.f32.mrb[0].mxu0
        %v701 = vadd.f32 0.0, %v700
        %v702 = vpop.f32.mrb[0].mxu0
        %v703 = vpop.f32.mrb[0].mxu0
        %v704 = vadd.f32 0.0, %v703
        %v705 = vpop.f32.mrb[0].mxu0
        %706 = vmatprep.mubr.bf16.mxu0 0
        %707 = vmatmul.mubr.bf16.gmra.mrb[0].mxu0 %v567
        %v708 = vpop.f32.mrb[0].mxu0
        %v709 = vadd.f32 0.0, %v708
        %v710 = vpop.f32.mrb[0].mxu0
        %v711 = vpop.f32.mrb[0].mxu0
        %v712 = vadd.f32 0.0, %v711
        %v713 = vpop.f32.mrb[0].mxu0
        %714 = vdwg.mxu0
        %v715 = vld [vmem:[%s5] sm:$0xf]
        %v716 = vld [vmem:[%s5 + $0x4] sm:$0xf]
        %v717 = vld [vmem:[%s5 + $0x8] sm:$0xf]
        %v718 = vld [vmem:[%s5 + $0xc] sm:$0xf]
        %v723 = vunpack.c.l.b16 %v715
        %v724 = vunpack.c.l.b16 %v716
        %v725 = vunpack.c.l.b16 %v717
        %v726 = vunpack.c.l.b16 %v718
        %v727 = vpack.c.b16 %v724, %v723
        %v728 = vpack.c.b16 %v726, %v725
        %731 = vmatprep.subr.bf16.mxu0 0
        %732 = vmatpush1.bf16.msra.mxu0 %v727
        %733 = vmatprep.subr.bf16.mxu0 0
        %734 = vmatpush1.bf16.msra.mxu0 %v728
        %735 = vmatprep.subr.bf16.mxu0 0
        %736 = vmatpush1.bf16.msra.mxu0 0
        %737 = vmatprep.subr.bf16.mxu0 0
        %738 = vmatpush1.bf16.msra.mxu0 0
        %739 = vmatprep.subr.bf16.mxu0 0
        %740 = vmatpush1.bf16.msra.mxu0 0
        %741 = vmatprep.subr.bf16.mxu0 0
        %742 = vmatpush1.bf16.msra.mxu0 0
        %743 = vmatprep.subr.bf16.mxu0 0
        %744 = vmatpush1.bf16.msra.mxu0 0
        %745 = vmatprep.subr.bf16.mxu0 0
        %746 = vmatpush1.bf16.msra.mxu0 0
        %747 = vmatprep.subr.bf16.mxu0 0
        %748 = vmatpush1.bf16.msra.mxu0 0
        %749 = vmatprep.subr.bf16.mxu0 0
        %750 = vmatpush1.bf16.msra.mxu0 0
        %751 = vmatprep.subr.bf16.mxu0 0
        %752 = vmatpush1.bf16.msra.mxu0 0
        %753 = vmatprep.subr.bf16.mxu0 0
        %754 = vmatpush1.bf16.msra.mxu0 0
        %755 = vmatprep.subr.bf16.mxu0 0
        %756 = vmatpush1.bf16.msra.mxu0 0
        %757 = vmatprep.subr.bf16.mxu0 0
        %758 = vmatpush1.bf16.msra.mxu0 0
        %759 = vmatprep.subr.bf16.mxu0 0
        %760 = vmatpush1.bf16.msra.mxu0 0
        %761 = vmatprep.subr.bf16.mxu0 0
        %762 = vmatpush1.bf16.msra.mxu0 0
        %763 = vmatprep.mubr.bf16.mxu0 0
        %764 = vmatmul.mubr.bf16.gmra.mrb[0].mxu0 %v558
        %v765 = vpop.f32.mrb[0].mxu0
        %v766 = vadd.f32 0.0, %v765
        %v767 = vpop.f32.mrb[0].mxu0
        %v768 = vpop.f32.mrb[0].mxu0
        %v769 = vadd.f32 0.0, %v768
        %v770 = vpop.f32.mrb[0].mxu0
        %771 = vmatprep.mubr.bf16.mxu0 0
        %772 = vmatmul.mubr.bf16.gmra.mrb[0].mxu0 %v561
        %v773 = vpop.f32.mrb[0].mxu0
        %v774 = vadd.f32 0.0, %v773
        %v775 = vpop.f32.mrb[0].mxu0
        %v776 = vpop.f32.mrb[0].mxu0
        %v777 = vadd.f32 0.0, %v776
        %v778 = vpop.f32.mrb[0].mxu0
        %779 = vmatprep.mubr.bf16.mxu0 0
        %780 = vmatmul.mubr.bf16.gmra.mrb[0].mxu0 %v564
        %v781 = vpop.f32.mrb[0].mxu0
        %v782 = vadd.f32 0.0, %v781
        %v783 = vpop.f32.mrb[0].mxu0
        %v784 = vpop.f32.mrb[0].mxu0
        %v785 = vadd.f32 0.0, %v784
        %v786 = vpop.f32.mrb[0].mxu0
        %787 = vmatprep.mubr.bf16.mxu0 0
        %788 = vmatmul.mubr.bf16.gmra.mrb[0].mxu0 %v567
        %v789 = vpop.f32.mrb[0].mxu0
        %v790 = vadd.f32 0.0, %v789
        %v791 = vpop.f32.mrb[0].mxu0
        %v792 = vpop.f32.mrb[0].mxu0
        %v793 = vadd.f32 0.0, %v792
        %v794 = vpop.f32.mrb[0].mxu0
        %795 = vdwg.mxu0
        %v797 = vsel %vm556, %v604, 0
        %v800 = vsel %vm556, %v685, 0
        %802 = vmatprep.subr.mxu0 0.0
        %803 = vmatpush1.xpose.msra.mxu0 %v800
        %804 = vmatprep.subr.mxu0 0.0
        %805 = vmatpush1.xpose.msra.mxu0 0.0
        %806 = vmatprep.subr.mxu0 0.0
        %807 = vmatpush1.xpose.msra.mxu0 0.0
        %808 = vmatprep.subr.mxu0 0.0
        %809 = vmatpush1.xpose.msra.mxu0 0.0
        %810 = vmatprep.subr.mxu0 0.0
        %811 = vmatpush1.xpose.msra.mxu0 0.0
        %812 = vmatprep.subr.mxu0 0.0
        %813 = vmatpush1.xpose.msra.mxu0 0.0
        %814 = vmatprep.subr.mxu0 0.0
        %815 = vmatpush1.xpose.msra.mxu0 0.0
        %816 = vmatprep.subr.mxu0 0.0
        %817 = vmatpush1.xpose.msra.mxu0 0.0
        %818 = vmatprep.subr.mxu0 0.0
        %819 = vmatpush1.xpose.msra.mxu0 0.0
        %820 = vmatprep.subr.mxu0 0.0
        %821 = vmatpush1.xpose.msra.mxu0 0.0
        %822 = vmatprep.subr.mxu0 0.0
        %823 = vmatpush1.xpose.msra.mxu0 0.0
        %824 = vmatprep.subr.mxu0 0.0
        %825 = vmatpush1.xpose.msra.mxu0 0.0
        %826 = vmatprep.subr.mxu0 0.0
        %827 = vmatpush1.xpose.msra.mxu0 0.0
        %828 = vmatprep.subr.mxu0 0.0
        %829 = vmatpush1.xpose.msra.mxu0 0.0
        %830 = vmatprep.subr.mxu0 0.0
        %831 = vmatpush1.xpose.msra.mxu0 0.0
        %832 = vmatprep.subr.mxu0 0.0
        %833 = vmatpush1.xpose.msra.mxu0 0.0
        %834 = vmatprep.subr.mxu0 0.0
        %835 = vmatpush1.xpose.msra.mxu0 0.0
        %836 = vmatprep.subr.mxu0 0.0
        %837 = vmatpush1.xpose.msra.mxu0 0.0
        %838 = vmatprep.subr.mxu0 0.0
        %839 = vmatpush1.xpose.msra.mxu0 0.0
        %840 = vmatprep.subr.mxu0 0.0
        %841 = vmatpush1.xpose.msra.mxu0 0.0
        %842 = vmatprep.subr.mxu0 0.0
        %843 = vmatpush1.xpose.msra.mxu0 0.0
        %844 = vmatprep.subr.mxu0 0.0
        %845 = vmatpush1.xpose.msra.mxu0 0.0
        %846 = vmatprep.subr.mxu0 0.0
        %847 = vmatpush1.xpose.msra.mxu0 0.0
        %848 = vmatprep.subr.mxu0 0.0
        %849 = vmatpush1.xpose.msra.mxu0 0.0
        %850 = vmatprep.subr.mxu0 0.0
        %851 = vmatpush1.xpose.msra.mxu0 0.0
        %852 = vmatprep.subr.mxu0 0.0
        %853 = vmatpush1.xpose.msra.mxu0 0.0
        %854 = vmatprep.subr.mxu0 0.0
        %855 = vmatpush1.xpose.msra.mxu0 0.0
        %856 = vmatprep.subr.mxu0 0.0
        %857 = vmatpush1.xpose.msra.mxu0 0.0
        %858 = vmatprep.subr.mxu0 0.0
        %859 = vmatpush1.xpose.msra.mxu0 0.0
        %860 = vmatprep.subr.mxu0 0.0
        %861 = vmatpush1.xpose.msra.mxu0 0.0
        %862 = vmatprep.subr.mxu0 0.0
        %863 = vmatpush1.xpose.msra.mxu0 0.0
        %864 = vmatprep.subr.mxu0 0.0
        %865 = vmatpush1.xpose.msra.mxu0 0.0
        %866 = vmatprep.mubr.f32.mxu0 0.0
        %867 = vmatmul.mubr.f32.gmra.mrb[0].mxu0 %v797
        %v868 = vpop.f32.mrb[0].mxu0
        %v869 = vadd.f32 0.0, %v868
        %v870 = vpop.f32.mrb[0].mxu0
        %871 = vdwg.mxu0
        %v873 = vsel %vm556, %v607, 0
        %v876 = vsel %vm556, %v688, 0
        %878 = vmatprep.subr.mxu0 0.0
        %879 = vmatpush1.xpose.msra.mxu0 %v876
        %880 = vmatprep.subr.mxu0 0.0
        %881 = vmatpush1.xpose.msra.mxu0 0.0
        %882 = vmatprep.subr.mxu0 0.0
        %883 = vmatpush1.xpose.msra.mxu0 0.0
        %884 = vmatprep.subr.mxu0 0.0
        %885 = vmatpush1.xpose.msra.mxu0 0.0
        %886 = vmatprep.subr.mxu0 0.0
        %887 = vmatpush1.xpose.msra.mxu0 0.0
        %888 = vmatprep.subr.mxu0 0.0
        %889 = vmatpush1.xpose.msra.mxu0 0.0
        %890 = vmatprep.subr.mxu0 0.0
        %891 = vmatpush1.xpose.msra.mxu0 0.0
        %892 = vmatprep.subr.mxu0 0.0
        %893 = vmatpush1.xpose.msra.mxu0 0.0
        %894 = vmatprep.subr.mxu0 0.0
        %895 = vmatpush1.xpose.msra.mxu0 0.0
        %896 = vmatprep.subr.mxu0 0.0
        %897 = vmatpush1.xpose.msra.mxu0 0.0
        %898 = vmatprep.subr.mxu0 0.0
        %899 = vmatpush1.xpose.msra.mxu0 0.0
        %900 = vmatprep.subr.mxu0 0.0
        %901 = vmatpush1.xpose.msra.mxu0 0.0
        %902 = vmatprep.subr.mxu0 0.0
        %903 = vmatpush1.xpose.msra.mxu0 0.0
        %904 = vmatprep.subr.mxu0 0.0
        %905 = vmatpush1.xpose.msra.mxu0 0.0
        %906 = vmatprep.subr.mxu0 0.0
        %907 = vmatpush1.xpose.msra.mxu0 0.0
        %908 = vmatprep.subr.mxu0 0.0
        %909 = vmatpush1.xpose.msra.mxu0 0.0
        %910 = vmatprep.subr.mxu0 0.0
        %911 = vmatpush1.xpose.msra.mxu0 0.0
        %912 = vmatprep.subr.mxu0 0.0
        %913 = vmatpush1.xpose.msra.mxu0 0.0
        %914 = vmatprep.subr.mxu0 0.0
        %915 = vmatpush1.xpose.msra.mxu0 0.0
        %916 = vmatprep.subr.mxu0 0.0
        %917 = vmatpush1.xpose.msra.mxu0 0.0
        %918 = vmatprep.subr.mxu0 0.0
        %919 = vmatpush1.xpose.msra.mxu0 0.0
        %920 = vmatprep.subr.mxu0 0.0
        %921 = vmatpush1.xpose.msra.mxu0 0.0
        %922 = vmatprep.subr.mxu0 0.0
        %923 = vmatpush1.xpose.msra.mxu0 0.0
        %924 = vmatprep.subr.mxu0 0.0
        %925 = vmatpush1.xpose.msra.mxu0 0.0
        %926 = vmatprep.subr.mxu0 0.0
        %927 = vmatpush1.xpose.msra.mxu0 0.0
        %928 = vmatprep.subr.mxu0 0.0
        %929 = vmatpush1.xpose.msra.mxu0 0.0
        %930 = vmatprep.subr.mxu0 0.0
        %931 = vmatpush1.xpose.msra.mxu0 0.0
        %932 = vmatprep.subr.mxu0 0.0
        %933 = vmatpush1.xpose.msra.mxu0 0.0
        %934 = vmatprep.subr.mxu0 0.0
        %935 = vmatpush1.xpose.msra.mxu0 0.0
        %936 = vmatprep.subr.mxu0 0.0
        %937 = vmatpush1.xpose.msra.mxu0 0.0
        %938 = vmatprep.subr.mxu0 0.0
        %939 = vmatpush1.xpose.msra.mxu0 0.0
        %940 = vmatprep.subr.mxu0 0.0
        %941 = vmatpush1.xpose.msra.mxu0 0.0
        %942 = vmatprep.mubr.f32.mxu0 0.0
        %943 = vmatmul.mubr.f32.gmra.mrb[0].mxu0 %v873
        %v944 = vpop.f32.mrb[0].mxu0
        %v945 = vadd.f32 0.0, %v944
        %v946 = vpop.f32.mrb[0].mxu0
        %947 = vdwg.mxu0
        %v949 = vsel %vm556, %v612, 0
        %v952 = vsel %vm556, %v693, 0
        %954 = vmatprep.subr.mxu0 0.0
        %955 = vmatpush1.xpose.msra.mxu0 %v952
        %956 = vmatprep.subr.mxu0 0.0
        %957 = vmatpush1.xpose.msra.mxu0 0.0
        %958 = vmatprep.subr.mxu0 0.0
        %959 = vmatpush1.xpose.msra.mxu0 0.0
        %960 = vmatprep.subr.mxu0 0.0
        %961 = vmatpush1.xpose.msra.mxu0 0.0
        %962 = vmatprep.subr.mxu0 0.0
        %963 = vmatpush1.xpose.msra.mxu0 0.0
        %964 = vmatprep.subr.mxu0 0.0
        %965 = vmatpush1.xpose.msra.mxu0 0.0
        %966 = vmatprep.subr.mxu0 0.0
        %967 = vmatpush1.xpose.msra.mxu0 0.0
        %968 = vmatprep.subr.mxu0 0.0
        %969 = vmatpush1.xpose.msra.mxu0 0.0
        %970 = vmatprep.subr.mxu0 0.0
        %971 = vmatpush1.xpose.msra.mxu0 0.0
        %972 = vmatprep.subr.mxu0 0.0
        %973 = vmatpush1.xpose.msra.mxu0 0.0
        %974 = vmatprep.subr.mxu0 0.0
        %975 = vmatpush1.xpose.msra.mxu0 0.0
        %976 = vmatprep.subr.mxu0 0.0
        %977 = vmatpush1.xpose.msra.mxu0 0.0
        %978 = vmatprep.subr.mxu0 0.0
        %979 = vmatpush1.xpose.msra.mxu0 0.0
        %980 = vmatprep.subr.mxu0 0.0
        %981 = vmatpush1.xpose.msra.mxu0 0.0
        %982 = vmatprep.subr.mxu0 0.0
        %983 = vmatpush1.xpose.msra.mxu0 0.0
        %984 = vmatprep.subr.mxu0 0.0
        %985 = vmatpush1.xpose.msra.mxu0 0.0
        %986 = vmatprep.subr.mxu0 0.0
        %987 = vmatpush1.xpose.msra.mxu0 0.0
        %988 = vmatprep.subr.mxu0 0.0
        %989 = vmatpush1.xpose.msra.mxu0 0.0
        %990 = vmatprep.subr.mxu0 0.0
        %991 = vmatpush1.xpose.msra.mxu0 0.0
        %992 = vmatprep.subr.mxu0 0.0
        %993 = vmatpush1.xpose.msra.mxu0 0.0
        %994 = vmatprep.subr.mxu0 0.0
        %995 = vmatpush1.xpose.msra.mxu0 0.0
        %996 = vmatprep.subr.mxu0 0.0
        %997 = vmatpush1.xpose.msra.mxu0 0.0
        %998 = vmatprep.subr.mxu0 0.0
        %999 = vmatpush1.xpose.msra.mxu0 0.0
        %1000 = vmatprep.subr.mxu0 0.0
        %1001 = vmatpush1.xpose.msra.mxu0 0.0
        %1002 = vmatprep.subr.mxu0 0.0
        %1003 = vmatpush1.xpose.msra.mxu0 0.0
        %1004 = vmatprep.subr.mxu0 0.0
        %1005 = vmatpush1.xpose.msra.mxu0 0.0
        %1006 = vmatprep.subr.mxu0 0.0
        %1007 = vmatpush1.xpose.msra.mxu0 0.0
        %1008 = vmatprep.subr.mxu0 0.0
        %1009 = vmatpush1.xpose.msra.mxu0 0.0
        %1010 = vmatprep.subr.mxu0 0.0
        %1011 = vmatpush1.xpose.msra.mxu0 0.0
        %1012 = vmatprep.subr.mxu0 0.0
        %1013 = vmatpush1.xpose.msra.mxu0 0.0
        %1014 = vmatprep.subr.mxu0 0.0
        %1015 = vmatpush1.xpose.msra.mxu0 0.0
        %1016 = vmatprep.subr.mxu0 0.0
        %1017 = vmatpush1.xpose.msra.mxu0 0.0
        %1018 = vmatprep.mubr.f32.mxu0 0.0
        %1019 = vmatmul.mubr.f32.gmra.mrb[0].mxu0 %v949
        %v1020 = vpop.f32.mrb[0].mxu0
        %v1021 = vadd.f32 0.0, %v1020
        %v1022 = vpop.f32.mrb[0].mxu0
        %1023 = vdwg.mxu0
        %v1025 = vsel %vm556, %v615, 0
        %v1028 = vsel %vm556, %v696, 0
        %1030 = vmatprep.subr.mxu0 0.0
        %1031 = vmatpush1.xpose.msra.mxu0 %v1028
        %1032 = vmatprep.subr.mxu0 0.0
        %1033 = vmatpush1.xpose.msra.mxu0 0.0
        %1034 = vmatprep.subr.mxu0 0.0
        %1035 = vmatpush1.xpose.msra.mxu0 0.0
        %1036 = vmatprep.subr.mxu0 0.0
        %1037 = vmatpush1.xpose.msra.mxu0 0.0
        %1038 = vmatprep.subr.mxu0 0.0
        %1039 = vmatpush1.xpose.msra.mxu0 0.0
        %1040 = vmatprep.subr.mxu0 0.0
        %1041 = vmatpush1.xpose.msra.mxu0 0.0
        %1042 = vmatprep.subr.mxu0 0.0
        %1043 = vmatpush1.xpose.msra.mxu0 0.0
        %1044 = vmatprep.subr.mxu0 0.0
        %1045 = vmatpush1.xpose.msra.mxu0 0.0
        %1046 = vmatprep.subr.mxu0 0.0
        %1047 = vmatpush1.xpose.msra.mxu0 0.0
        %1048 = vmatprep.subr.mxu0 0.0
        %1049 = vmatpush1.xpose.msra.mxu0 0.0
        %1050 = vmatprep.subr.mxu0 0.0
        %1051 = vmatpush1.xpose.msra.mxu0 0.0
        %1052 = vmatprep.subr.mxu0 0.0
        %1053 = vmatpush1.xpose.msra.mxu0 0.0
        %1054 = vmatprep.subr.mxu0 0.0
        %1055 = vmatpush1.xpose.msra.mxu0 0.0
        %1056 = vmatprep.subr.mxu0 0.0
        %1057 = vmatpush1.xpose.msra.mxu0 0.0
        %1058 = vmatprep.subr.mxu0 0.0
        %1059 = vmatpush1.xpose.msra.mxu0 0.0
        %1060 = vmatprep.subr.mxu0 0.0
        %1061 = vmatpush1.xpose.msra.mxu0 0.0
        %1062 = vmatprep.subr.mxu0 0.0
        %1063 = vmatpush1.xpose.msra.mxu0 0.0
        %1064 = vmatprep.subr.mxu0 0.0
        %1065 = vmatpush1.xpose.msra.mxu0 0.0
        %1066 = vmatprep.subr.mxu0 0.0
        %1067 = vmatpush1.xpose.msra.mxu0 0.0
        %1068 = vmatprep.subr.mxu0 0.0
        %1069 = vmatpush1.xpose.msra.mxu0 0.0
        %1070 = vmatprep.subr.mxu0 0.0
        %1071 = vmatpush1.xpose.msra.mxu0 0.0
        %1072 = vmatprep.subr.mxu0 0.0
        %1073 = vmatpush1.xpose.msra.mxu0 0.0
        %1074 = vmatprep.subr.mxu0 0.0
        %1075 = vmatpush1.xpose.msra.mxu0 0.0
        %1076 = vmatprep.subr.mxu0 0.0
        %1077 = vmatpush1.xpose.msra.mxu0 0.0
        %1078 = vmatprep.subr.mxu0 0.0
        %1079 = vmatpush1.xpose.msra.mxu0 0.0
        %1080 = vmatprep.subr.mxu0 0.0
        %1081 = vmatpush1.xpose.msra.mxu0 0.0
        %1082 = vmatprep.subr.mxu0 0.0
        %1083 = vmatpush1.xpose.msra.mxu0 0.0
        %1084 = vmatprep.subr.mxu0 0.0
        %1085 = vmatpush1.xpose.msra.mxu0 0.0
        %1086 = vmatprep.subr.mxu0 0.0
        %1087 = vmatpush1.xpose.msra.mxu0 0.0
        %1088 = vmatprep.subr.mxu0 0.0
        %1089 = vmatpush1.xpose.msra.mxu0 0.0
        %1090 = vmatprep.subr.mxu0 0.0
        %1091 = vmatpush1.xpose.msra.mxu0 0.0
        %1092 = vmatprep.subr.mxu0 0.0
        %1093 = vmatpush1.xpose.msra.mxu0 0.0
        %1094 = vmatprep.mubr.f32.mxu0 0.0
        %1095 = vmatmul.mubr.f32.gmra.mrb[0].mxu0 %v1025
        %v1096 = vpop.f32.mrb[0].mxu0
        %v1097 = vadd.f32 0.0, %v1096
        %v1098 = vpop.f32.mrb[0].mxu0
        %1099 = vdwg.mxu0
        %v1101 = vsel %vm556, %v620, 0
        %v1104 = vsel %vm556, %v701, 0
        %1106 = vmatprep.subr.mxu0 0.0
        %1107 = vmatpush1.xpose.msra.mxu0 %v1104
        %1108 = vmatprep.subr.mxu0 0.0
        %1109 = vmatpush1.xpose.msra.mxu0 0.0
        %1110 = vmatprep.subr.mxu0 0.0
        %1111 = vmatpush1.xpose.msra.mxu0 0.0
        %1112 = vmatprep.subr.mxu0 0.0
        %1113 = vmatpush1.xpose.msra.mxu0 0.0
        %1114 = vmatprep.subr.mxu0 0.0
        %1115 = vmatpush1.xpose.msra.mxu0 0.0
        %1116 = vmatprep.subr.mxu0 0.0
        %1117 = vmatpush1.xpose.msra.mxu0 0.0
        %1118 = vmatprep.subr.mxu0 0.0
        %1119 = vmatpush1.xpose.msra.mxu0 0.0
        %1120 = vmatprep.subr.mxu0 0.0
        %1121 = vmatpush1.xpose.msra.mxu0 0.0
        %1122 = vmatprep.subr.mxu0 0.0
        %1123 = vmatpush1.xpose.msra.mxu0 0.0
        %1124 = vmatprep.subr.mxu0 0.0
        %1125 = vmatpush1.xpose.msra.mxu0 0.0
        %1126 = vmatprep.subr.mxu0 0.0
        %1127 = vmatpush1.xpose.msra.mxu0 0.0
        %1128 = vmatprep.subr.mxu0 0.0
        %1129 = vmatpush1.xpose.msra.mxu0 0.0
        %1130 = vmatprep.subr.mxu0 0.0
        %1131 = vmatpush1.xpose.msra.mxu0 0.0
        %1132 = vmatprep.subr.mxu0 0.0
        %1133 = vmatpush1.xpose.msra.mxu0 0.0
        %1134 = vmatprep.subr.mxu0 0.0
        %1135 = vmatpush1.xpose.msra.mxu0 0.0
        %1136 = vmatprep.subr.mxu0 0.0
        %1137 = vmatpush1.xpose.msra.mxu0 0.0
        %1138 = vmatprep.subr.mxu0 0.0
        %1139 = vmatpush1.xpose.msra.mxu0 0.0
        %1140 = vmatprep.subr.mxu0 0.0
        %1141 = vmatpush1.xpose.msra.mxu0 0.0
        %1142 = vmatprep.subr.mxu0 0.0
        %1143 = vmatpush1.xpose.msra.mxu0 0.0
        %1144 = vmatprep.subr.mxu0 0.0
        %1145 = vmatpush1.xpose.msra.mxu0 0.0
        %1146 = vmatprep.subr.mxu0 0.0
        %1147 = vmatpush1.xpose.msra.mxu0 0.0
        %1148 = vmatprep.subr.mxu0 0.0
        %1149 = vmatpush1.xpose.msra.mxu0 0.0
        %1150 = vmatprep.subr.mxu0 0.0
        %1151 = vmatpush1.xpose.msra.mxu0 0.0
        %1152 = vmatprep.subr.mxu0 0.0
        %1153 = vmatpush1.xpose.msra.mxu0 0.0
        %1154 = vmatprep.subr.mxu0 0.0
        %1155 = vmatpush1.xpose.msra.mxu0 0.0
        %1156 = vmatprep.subr.mxu0 0.0
        %1157 = vmatpush1.xpose.msra.mxu0 0.0
        %1158 = vmatprep.subr.mxu0 0.0
        %1159 = vmatpush1.xpose.msra.mxu0 0.0
        %1160 = vmatprep.subr.mxu0 0.0
        %1161 = vmatpush1.xpose.msra.mxu0 0.0
        %1162 = vmatprep.subr.mxu0 0.0
        %1163 = vmatpush1.xpose.msra.mxu0 0.0
        %1164 = vmatprep.subr.mxu0 0.0
        %1165 = vmatpush1.xpose.msra.mxu0 0.0
        %1166 = vmatprep.subr.mxu0 0.0
        %1167 = vmatpush1.xpose.msra.mxu0 0.0
        %1168 = vmatprep.subr.mxu0 0.0
        %1169 = vmatpush1.xpose.msra.mxu0 0.0
        %1170 = vmatprep.mubr.f32.mxu0 0.0
        %1171 = vmatmul.mubr.f32.gmra.mrb[0].mxu0 %v1101
        %v1172 = vpop.f32.mrb[0].mxu0
        %v1173 = vadd.f32 0.0, %v1172
        %v1174 = vpop.f32.mrb[0].mxu0
        %1175 = vdwg.mxu0
        %v1177 = vsel %vm556, %v623, 0
        %v1180 = vsel %vm556, %v704, 0
        %1182 = vmatprep.subr.mxu0 0.0
        %1183 = vmatpush1.xpose.msra.mxu0 %v1180
        %1184 = vmatprep.subr.mxu0 0.0
        %1185 = vmatpush1.xpose.msra.mxu0 0.0
        %1186 = vmatprep.subr.mxu0 0.0
        %1187 = vmatpush1.xpose.msra.mxu0 0.0
        %1188 = vmatprep.subr.mxu0 0.0
        %1189 = vmatpush1.xpose.msra.mxu0 0.0
        %1190 = vmatprep.subr.mxu0 0.0
        %1191 = vmatpush1.xpose.msra.mxu0 0.0
        %1192 = vmatprep.subr.mxu0 0.0
        %1193 = vmatpush1.xpose.msra.mxu0 0.0
        %1194 = vmatprep.subr.mxu0 0.0
        %1195 = vmatpush1.xpose.msra.mxu0 0.0
        %1196 = vmatprep.subr.mxu0 0.0
        %1197 = vmatpush1.xpose.msra.mxu0 0.0
        %1198 = vmatprep.subr.mxu0 0.0
        %1199 = vmatpush1.xpose.msra.mxu0 0.0
        %1200 = vmatprep.subr.mxu0 0.0
        %1201 = vmatpush1.xpose.msra.mxu0 0.0
        %1202 = vmatprep.subr.mxu0 0.0
        %1203 = vmatpush1.xpose.msra.mxu0 0.0
        %1204 = vmatprep.subr.mxu0 0.0
        %1205 = vmatpush1.xpose.msra.mxu0 0.0
        %1206 = vmatprep.subr.mxu0 0.0
        %1207 = vmatpush1.xpose.msra.mxu0 0.0
        %1208 = vmatprep.subr.mxu0 0.0
        %1209 = vmatpush1.xpose.msra.mxu0 0.0
        %1210 = vmatprep.subr.mxu0 0.0
        %1211 = vmatpush1.xpose.msra.mxu0 0.0
        %1212 = vmatprep.subr.mxu0 0.0
        %1213 = vmatpush1.xpose.msra.mxu0 0.0
        %1214 = vmatprep.subr.mxu0 0.0
        %1215 = vmatpush1.xpose.msra.mxu0 0.0
        %1216 = vmatprep.subr.mxu0 0.0
        %1217 = vmatpush1.xpose.msra.mxu0 0.0
        %1218 = vmatprep.subr.mxu0 0.0
        %1219 = vmatpush1.xpose.msra.mxu0 0.0
        %1220 = vmatprep.subr.mxu0 0.0
        %1221 = vmatpush1.xpose.msra.mxu0 0.0
        %1222 = vmatprep.subr.mxu0 0.0
        %1223 = vmatpush1.xpose.msra.mxu0 0.0
        %1224 = vmatprep.subr.mxu0 0.0
        %1225 = vmatpush1.xpose.msra.mxu0 0.0
        %1226 = vmatprep.subr.mxu0 0.0
        %1227 = vmatpush1.xpose.msra.mxu0 0.0
        %1228 = vmatprep.subr.mxu0 0.0
        %1229 = vmatpush1.xpose.msra.mxu0 0.0
        %1230 = vmatprep.subr.mxu0 0.0
        %1231 = vmatpush1.xpose.msra.mxu0 0.0
        %1232 = vmatprep.subr.mxu0 0.0
        %1233 = vmatpush1.xpose.msra.mxu0 0.0
        %1234 = vmatprep.subr.mxu0 0.0
        %1235 = vmatpush1.xpose.msra.mxu0 0.0
        %1236 = vmatprep.subr.mxu0 0.0
        %1237 = vmatpush1.xpose.msra.mxu0 0.0
        %1238 = vmatprep.subr.mxu0 0.0
        %1239 = vmatpush1.xpose.msra.mxu0 0.0
        %1240 = vmatprep.subr.mxu0 0.0
        %1241 = vmatpush1.xpose.msra.mxu0 0.0
        %1242 = vmatprep.subr.mxu0 0.0
        %1243 = vmatpush1.xpose.msra.mxu0 0.0
        %1244 = vmatprep.subr.mxu0 0.0
        %1245 = vmatpush1.xpose.msra.mxu0 0.0
        %1246 = vmatprep.mubr.f32.mxu0 0.0
        %1247 = vmatmul.mubr.f32.gmra.mrb[0].mxu0 %v1177
        %v1248 = vpop.f32.mrb[0].mxu0
        %v1249 = vadd.f32 0.0, %v1248
        %v1250 = vpop.f32.mrb[0].mxu0
        %1251 = vdwg.mxu0
        %v1253 = vsel %vm556, %v628, 0
        %v1256 = vsel %vm556, %v709, 0
        %1258 = vmatprep.subr.mxu0 0.0
        %1259 = vmatpush1.xpose.msra.mxu0 %v1256
        %1260 = vmatprep.subr.mxu0 0.0
        %1261 = vmatpush1.xpose.msra.mxu0 0.0
        %1262 = vmatprep.subr.mxu0 0.0
        %1263 = vmatpush1.xpose.msra.mxu0 0.0
        %1264 = vmatprep.subr.mxu0 0.0
        %1265 = vmatpush1.xpose.msra.mxu0 0.0
        %1266 = vmatprep.subr.mxu0 0.0
        %1267 = vmatpush1.xpose.msra.mxu0 0.0
        %1268 = vmatprep.subr.mxu0 0.0
        %1269 = vmatpush1.xpose.msra.mxu0 0.0
        %1270 = vmatprep.subr.mxu0 0.0
        %1271 = vmatpush1.xpose.msra.mxu0 0.0
        %1272 = vmatprep.subr.mxu0 0.0
        %1273 = vmatpush1.xpose.msra.mxu0 0.0
        %1274 = vmatprep.subr.mxu0 0.0
        %1275 = vmatpush1.xpose.msra.mxu0 0.0
        %1276 = vmatprep.subr.mxu0 0.0
        %1277 = vmatpush1.xpose.msra.mxu0 0.0
        %1278 = vmatprep.subr.mxu0 0.0
        %1279 = vmatpush1.xpose.msra.mxu0 0.0
        %1280 = vmatprep.subr.mxu0 0.0
        %1281 = vmatpush1.xpose.msra.mxu0 0.0
        %1282 = vmatprep.subr.mxu0 0.0
        %1283 = vmatpush1.xpose.msra.mxu0 0.0
        %1284 = vmatprep.subr.mxu0 0.0
        %1285 = vmatpush1.xpose.msra.mxu0 0.0
        %1286 = vmatprep.subr.mxu0 0.0
        %1287 = vmatpush1.xpose.msra.mxu0 0.0
        %1288 = vmatprep.subr.mxu0 0.0
        %1289 = vmatpush1.xpose.msra.mxu0 0.0
        %1290 = vmatprep.subr.mxu0 0.0
        %1291 = vmatpush1.xpose.msra.mxu0 0.0
        %1292 = vmatprep.subr.mxu0 0.0
        %1293 = vmatpush1.xpose.msra.mxu0 0.0
        %1294 = vmatprep.subr.mxu0 0.0
        %1295 = vmatpush1.xpose.msra.mxu0 0.0
        %1296 = vmatprep.subr.mxu0 0.0
        %1297 = vmatpush1.xpose.msra.mxu0 0.0
        %1298 = vmatprep.subr.mxu0 0.0
        %1299 = vmatpush1.xpose.msra.mxu0 0.0
        %1300 = vmatprep.subr.mxu0 0.0
        %1301 = vmatpush1.xpose.msra.mxu0 0.0
        %1302 = vmatprep.subr.mxu0 0.0
        %1303 = vmatpush1.xpose.msra.mxu0 0.0
        %1304 = vmatprep.subr.mxu0 0.0
        %1305 = vmatpush1.xpose.msra.mxu0 0.0
        %1306 = vmatprep.subr.mxu0 0.0
        %1307 = vmatpush1.xpose.msra.mxu0 0.0
        %1308 = vmatprep.subr.mxu0 0.0
        %1309 = vmatpush1.xpose.msra.mxu0 0.0
        %1310 = vmatprep.subr.mxu0 0.0
        %1311 = vmatpush1.xpose.msra.mxu0 0.0
        %1312 = vmatprep.subr.mxu0 0.0
        %1313 = vmatpush1.xpose.msra.mxu0 0.0
        %1314 = vmatprep.subr.mxu0 0.0
        %1315 = vmatpush1.xpose.msra.mxu0 0.0
        %1316 = vmatprep.subr.mxu0 0.0
        %1317 = vmatpush1.xpose.msra.mxu0 0.0
        %1318 = vmatprep.subr.mxu0 0.0
        %1319 = vmatpush1.xpose.msra.mxu0 0.0
        %1320 = vmatprep.subr.mxu0 0.0
        %1321 = vmatpush1.xpose.msra.mxu0 0.0
        %1322 = vmatprep.mubr.f32.mxu0 0.0
        %1323 = vmatmul.mubr.f32.gmra.mrb[0].mxu0 %v1253
        %v1324 = vpop.f32.mrb[0].mxu0
        %v1325 = vadd.f32 0.0, %v1324
        %v1326 = vpop.f32.mrb[0].mxu0
        %1327 = vdwg.mxu0
        %v1329 = vsel %vm556, %v631, 0
        %v1332 = vsel %vm556, %v712, 0
        %1334 = vmatprep.subr.mxu0 0.0
        %1335 = vmatpush1.xpose.msra.mxu0 %v1332
        %1336 = vmatprep.subr.mxu0 0.0
        %1337 = vmatpush1.xpose.msra.mxu0 0.0
        %1338 = vmatprep.subr.mxu0 0.0
        %1339 = vmatpush1.xpose.msra.mxu0 0.0
        %1340 = vmatprep.subr.mxu0 0.0
        %1341 = vmatpush1.xpose.msra.mxu0 0.0
        %1342 = vmatprep.subr.mxu0 0.0
        %1343 = vmatpush1.xpose.msra.mxu0 0.0
        %1344 = vmatprep.subr.mxu0 0.0
        %1345 = vmatpush1.xpose.msra.mxu0 0.0
        %1346 = vmatprep.subr.mxu0 0.0
        %1347 = vmatpush1.xpose.msra.mxu0 0.0
        %1348 = vmatprep.subr.mxu0 0.0
        %1349 = vmatpush1.xpose.msra.mxu0 0.0
        %1350 = vmatprep.subr.mxu0 0.0
        %1351 = vmatpush1.xpose.msra.mxu0 0.0
        %1352 = vmatprep.subr.mxu0 0.0
        %1353 = vmatpush1.xpose.msra.mxu0 0.0
        %1354 = vmatprep.subr.mxu0 0.0
        %1355 = vmatpush1.xpose.msra.mxu0 0.0
        %1356 = vmatprep.subr.mxu0 0.0
        %1357 = vmatpush1.xpose.msra.mxu0 0.0
        %1358 = vmatprep.subr.mxu0 0.0
        %1359 = vmatpush1.xpose.msra.mxu0 0.0
        %1360 = vmatprep.subr.mxu0 0.0
        %1361 = vmatpush1.xpose.msra.mxu0 0.0
        %1362 = vmatprep.subr.mxu0 0.0
        %1363 = vmatpush1.xpose.msra.mxu0 0.0
        %1364 = vmatprep.subr.mxu0 0.0
        %1365 = vmatpush1.xpose.msra.mxu0 0.0
        %1366 = vmatprep.subr.mxu0 0.0
        %1367 = vmatpush1.xpose.msra.mxu0 0.0
        %1368 = vmatprep.subr.mxu0 0.0
        %1369 = vmatpush1.xpose.msra.mxu0 0.0
        %1370 = vmatprep.subr.mxu0 0.0
        %1371 = vmatpush1.xpose.msra.mxu0 0.0
        %1372 = vmatprep.subr.mxu0 0.0
        %1373 = vmatpush1.xpose.msra.mxu0 0.0
        %1374 = vmatprep.subr.mxu0 0.0
        %1375 = vmatpush1.xpose.msra.mxu0 0.0
        %1376 = vmatprep.subr.mxu0 0.0
        %1377 = vmatpush1.xpose.msra.mxu0 0.0
        %1378 = vmatprep.subr.mxu0 0.0
        %1379 = vmatpush1.xpose.msra.mxu0 0.0
        %1380 = vmatprep.subr.mxu0 0.0
        %1381 = vmatpush1.xpose.msra.mxu0 0.0
        %1382 = vmatprep.subr.mxu0 0.0
        %1383 = vmatpush1.xpose.msra.mxu0 0.0
        %1384 = vmatprep.subr.mxu0 0.0
        %1385 = vmatpush1.xpose.msra.mxu0 0.0
        %1386 = vmatprep.subr.mxu0 0.0
        %1387 = vmatpush1.xpose.msra.mxu0 0.0
        %1388 = vmatprep.subr.mxu0 0.0
        %1389 = vmatpush1.xpose.msra.mxu0 0.0
        %1390 = vmatprep.subr.mxu0 0.0
        %1391 = vmatpush1.xpose.msra.mxu0 0.0
        %1392 = vmatprep.subr.mxu0 0.0
        %1393 = vmatpush1.xpose.msra.mxu0 0.0
        %1394 = vmatprep.subr.mxu0 0.0
        %1395 = vmatpush1.xpose.msra.mxu0 0.0
        %1396 = vmatprep.subr.mxu0 0.0
        %1397 = vmatpush1.xpose.msra.mxu0 0.0
        %1398 = vmatprep.mubr.f32.mxu0 0.0
        %1399 = vmatmul.mubr.f32.gmra.mrb[0].mxu0 %v1329
        %v1400 = vpop.f32.mrb[0].mxu0
        %v1401 = vadd.f32 0.0, %v1400
        %v1402 = vpop.f32.mrb[0].mxu0
        %1403 = vdwg.mxu0
        %v1404 = vmul.f32 %v869, 0.17677669
        %v1405 = vmul.f32 %v945, 0.17677669
        %v1406 = vmul.f32 %v1021, 0.17677669
        %v1407 = vmul.f32 %v1097, 0.17677669
        %v1408 = vmul.f32 %v1173, 0.17677669
        %v1409 = vmul.f32 %v1249, 0.17677669
        %v1410 = vmul.f32 %v1325, 0.17677669
        %v1411 = vmul.f32 %v1401, 0.17677669
        %v1412 = vlaneseq
        %v1413 = vshrl.u32 %v1412, 7
        %vm1414 = vcmp.gt.s32.totalorder %v317, %v1413
        %v1415 = vsel %vm1414, -inf, %v1404
        %v1416 = vsel %vm1414, -inf, %v1405
        %v1417 = vsel %vm1414, -inf, %v1406
        %v1418 = vsel %vm1414, -inf, %v1407
        %v1419 = vsel %vm1414, -inf, %v1408
        %v1420 = vsel %vm1414, -inf, %v1409
        %v1421 = vsel %vm1414, -inf, %v1410
        %v1422 = vsel %vm1414, -inf, %v1411
        %vm1423 = vcmask 64512
        %v1424 = vsel %vm1423, %v1415, -inf
        %v1425 = vrot.slane %v1424, 4
        %v1426 = vmax.f32 %v1424, %v1425
        %v1427 = vrot.slane %v1426, 2
        %v1428 = vmax.f32 %v1426, %v1427
        %v1429 = vrot.slane %v1428, 1
        %v1430 = vmax.f32 %v1428, %v1429
        %v1431 = vsel %vm1423, %v1416, -inf
        %v1432 = vrot.slane %v1431, 4
        %v1433 = vmax.f32 %v1431, %v1432
        %v1434 = vrot.slane %v1433, 2
        %v1435 = vmax.f32 %v1433, %v1434
        %v1436 = vrot.slane %v1435, 1
        %v1437 = vmax.f32 %v1435, %v1436
        %v1438 = vsel %vm1423, %v1417, -inf
        %v1439 = vrot.slane %v1438, 4
        %v1440 = vmax.f32 %v1438, %v1439
        %v1441 = vrot.slane %v1440, 2
        %v1442 = vmax.f32 %v1440, %v1441
        %v1443 = vrot.slane %v1442, 1
        %v1444 = vmax.f32 %v1442, %v1443
        %v1445 = vsel %vm1423, %v1418, -inf
        %v1446 = vrot.slane %v1445, 4
        %v1447 = vmax.f32 %v1445, %v1446
        %v1448 = vrot.slane %v1447, 2
        %v1449 = vmax.f32 %v1447, %v1448
        %v1450 = vrot.slane %v1449, 1
        %v1451 = vmax.f32 %v1449, %v1450
        %v1452 = vsel %vm1423, %v1419, -inf
        %v1453 = vrot.slane %v1452, 4
        %v1454 = vmax.f32 %v1452, %v1453
        %v1455 = vrot.slane %v1454, 2
        %v1456 = vmax.f32 %v1454, %v1455
        %v1457 = vrot.slane %v1456, 1
        %v1458 = vmax.f32 %v1456, %v1457
        %v1459 = vsel %vm1423, %v1420, -inf
        %v1460 = vrot.slane %v1459, 4
        %v1461 = vmax.f32 %v1459, %v1460
        %v1462 = vrot.slane %v1461, 2
        %v1463 = vmax.f32 %v1461, %v1462
        %v1464 = vrot.slane %v1463, 1
        %v1465 = vmax.f32 %v1463, %v1464
        %v1466 = vsel %vm1423, %v1421, -inf
        %v1467 = vrot.slane %v1466, 4
        %v1468 = vmax.f32 %v1466, %v1467
        %v1469 = vrot.slane %v1468, 2
        %v1470 = vmax.f32 %v1468, %v1469
        %v1471 = vrot.slane %v1470, 1
        %v1472 = vmax.f32 %v1470, %v1471
        %v1473 = vsel %vm1423, %v1422, -inf
        %v1474 = vrot.slane %v1473, 4
        %v1475 = vmax.f32 %v1473, %v1474
        %v1476 = vrot.slane %v1475, 2
        %v1477 = vmax.f32 %v1475, %v1476
        %v1478 = vrot.slane %v1477, 1
        %v1479 = vmax.f32 %v1477, %v1478
        %v1480 = vsub.f32 %v1415, %v1430
        %v1481 = vsub.f32 %v1416, %v1437
        %v1482 = vsub.f32 %v1417, %v1444
        %v1483 = vsub.f32 %v1418, %v1451
        %v1484 = vsub.f32 %v1419, %v1458
        %v1485 = vsub.f32 %v1420, %v1465
        %v1486 = vsub.f32 %v1421, %v1472
        %v1487 = vsub.f32 %v1422, %v1479
        %v1488 = vmul.f32 %v1480, 1.442695
        %v1489 = vpow.pop %v1488
        %v1490 = vmul.f32 %v1481, 1.442695
        %v1491 = vpow.pop %v1490
        %v1492 = vmul.f32 %v1482, 1.442695
        %v1493 = vpow.pop %v1492
        %v1494 = vmul.f32 %v1483, 1.442695
        %v1495 = vpow.pop %v1494
        %v1496 = vmul.f32 %v1484, 1.442695
        %v1497 = vpow.pop %v1496
        %v1498 = vmul.f32 %v1485, 1.442695
        %v1499 = vpow.pop %v1498
        %v1500 = vmul.f32 %v1486, 1.442695
        %v1501 = vpow.pop %v1500
        %v1502 = vmul.f32 %v1487, 1.442695
        %v1503 = vpow.pop %v1502
        %v1504 = vsel %vm1423, %v1489, 0.0
        %v1505 = vrot.slane %v1504, 4
        %v1506 = vadd.f32 %v1504, %v1505
        %v1507 = vrot.slane %v1506, 2
        %v1508 = vadd.f32 %v1506, %v1507
        %v1509 = vrot.slane %v1508, 1
        %v1510 = vadd.f32 %v1508, %v1509
        %v1511 = vsel %vm1423, %v1491, 0.0
        %v1512 = vrot.slane %v1511, 4
        %v1513 = vadd.f32 %v1511, %v1512
        %v1514 = vrot.slane %v1513, 2
        %v1515 = vadd.f32 %v1513, %v1514
        %v1516 = vrot.slane %v1515, 1
        %v1517 = vadd.f32 %v1515, %v1516
        %v1518 = vsel %vm1423, %v1493, 0.0
        %v1519 = vrot.slane %v1518, 4
        %v1520 = vadd.f32 %v1518, %v1519
        %v1521 = vrot.slane %v1520, 2
        %v1522 = vadd.f32 %v1520, %v1521
        %v1523 = vrot.slane %v1522, 1
        %v1524 = vadd.f32 %v1522, %v1523
        %v1525 = vsel %vm1423, %v1495, 0.0
        %v1526 = vrot.slane %v1525, 4
        %v1527 = vadd.f32 %v1525, %v1526
        %v1528 = vrot.slane %v1527, 2
        %v1529 = vadd.f32 %v1527, %v1528
        %v1530 = vrot.slane %v1529, 1
        %v1531 = vadd.f32 %v1529, %v1530
        %v1532 = vsel %vm1423, %v1497, 0.0
        %v1533 = vrot.slane %v1532, 4
        %v1534 = vadd.f32 %v1532, %v1533
        %v1535 = vrot.slane %v1534, 2
        %v1536 = vadd.f32 %v1534, %v1535
        %v1537 = vrot.slane %v1536, 1
        %v1538 = vadd.f32 %v1536, %v1537
        %v1539 = vsel %vm1423, %v1499, 0.0
        %v1540 = vrot.slane %v1539, 4
        %v1541 = vadd.f32 %v1539, %v1540
        %v1542 = vrot.slane %v1541, 2
        %v1543 = vadd.f32 %v1541, %v1542
        %v1544 = vrot.slane %v1543, 1
        %v1545 = vadd.f32 %v1543, %v1544
        %v1546 = vsel %vm1423, %v1501, 0.0
        %v1547 = vrot.slane %v1546, 4
        %v1548 = vadd.f32 %v1546, %v1547
        %v1549 = vrot.slane %v1548, 2
        %v1550 = vadd.f32 %v1548, %v1549
        %v1551 = vrot.slane %v1550, 1
        %v1552 = vadd.f32 %v1550, %v1551
        %v1553 = vsel %vm1423, %v1503, 0.0
        %v1554 = vrot.slane %v1553, 4
        %v1555 = vadd.f32 %v1553, %v1554
        %v1556 = vrot.slane %v1555, 2
        %v1557 = vadd.f32 %v1555, %v1556
        %v1558 = vrot.slane %v1557, 1
        %v1559 = vadd.f32 %v1557, %v1558
        %v1560 = vrcp.pop %v1510
        %v1561 = vmul.f32 %v1489, %v1560
        %v1562 = vrcp.pop %v1517
        %v1563 = vmul.f32 %v1491, %v1562
        %v1564 = vrcp.pop %v1524
        %v1565 = vmul.f32 %v1493, %v1564
        %v1566 = vrcp.pop %v1531
        %v1567 = vmul.f32 %v1495, %v1566
        %v1568 = vrcp.pop %v1538
        %v1569 = vmul.f32 %v1497, %v1568
        %v1570 = vrcp.pop %v1545
        %v1571 = vmul.f32 %v1499, %v1570
        %v1572 = vrcp.pop %v1552
        %v1573 = vmul.f32 %v1501, %v1572
        %v1574 = vrcp.pop %v1559
        %v1575 = vmul.f32 %v1503, %v1574
        %v1577 = vsel %vm1423, %v1561, 0
        %1579 = vmatprep.subr.mxu0 0.0
        %1580 = vmatpush1.msra.mxu0 %v766
        %1581 = vmatprep.subr.mxu0 0.0
        %1582 = vmatpush1.msra.mxu0 0.0
        %1583 = vmatprep.subr.mxu0 0.0
        %1584 = vmatpush1.msra.mxu0 0.0
        %1585 = vmatprep.subr.mxu0 0.0
        %1586 = vmatpush1.msra.mxu0 0.0
        %1587 = vmatprep.subr.mxu0 0.0
        %1588 = vmatpush1.msra.mxu0 0.0
        %1589 = vmatprep.subr.mxu0 0.0
        %1590 = vmatpush1.msra.mxu0 0.0
        %1591 = vmatprep.subr.mxu0 0.0
        %1592 = vmatpush1.msra.mxu0 0.0
        %1593 = vmatprep.subr.mxu0 0.0
        %1594 = vmatpush1.msra.mxu0 0.0
        %1595 = vmatprep.subr.mxu0 0.0
        %1596 = vmatpush1.msra.mxu0 0.0
        %1597 = vmatprep.subr.mxu0 0.0
        %1598 = vmatpush1.msra.mxu0 0.0
        %1599 = vmatprep.subr.mxu0 0.0
        %1600 = vmatpush1.msra.mxu0 0.0
        %1601 = vmatprep.subr.mxu0 0.0
        %1602 = vmatpush1.msra.mxu0 0.0
        %1603 = vmatprep.subr.mxu0 0.0
        %1604 = vmatpush1.msra.mxu0 0.0
        %1605 = vmatprep.subr.mxu0 0.0
        %1606 = vmatpush1.msra.mxu0 0.0
        %1607 = vmatprep.subr.mxu0 0.0
        %1608 = vmatpush1.msra.mxu0 0.0
        %1609 = vmatprep.subr.mxu0 0.0
        %1610 = vmatpush1.msra.mxu0 0.0
        %1611 = vmatprep.subr.mxu0 0.0
        %1612 = vmatpush1.msra.mxu0 0.0
        %1613 = vmatprep.subr.mxu0 0.0
        %1614 = vmatpush1.msra.mxu0 0.0
        %1615 = vmatprep.subr.mxu0 0.0
        %1616 = vmatpush1.msra.mxu0 0.0
        %1617 = vmatprep.subr.mxu0 0.0
        %1618 = vmatpush1.msra.mxu0 0.0
        %1619 = vmatprep.subr.mxu0 0.0
        %1620 = vmatpush1.msra.mxu0 0.0
        %1621 = vmatprep.subr.mxu0 0.0
        %1622 = vmatpush1.msra.mxu0 0.0
        %1623 = vmatprep.subr.mxu0 0.0
        %1624 = vmatpush1.msra.mxu0 0.0
        %1625 = vmatprep.subr.mxu0 0.0
        %1626 = vmatpush1.msra.mxu0 0.0
        %1627 = vmatprep.subr.mxu0 0.0
        %1628 = vmatpush1.msra.mxu0 0.0
        %1629 = vmatprep.subr.mxu0 0.0
        %1630 = vmatpush1.msra.mxu0 0.0
        %1631 = vmatprep.subr.mxu0 0.0
        %1632 = vmatpush1.msra.mxu0 0.0
        %1633 = vmatprep.subr.mxu0 0.0
        %1634 = vmatpush1.msra.mxu0 0.0
        %1635 = vmatprep.subr.mxu0 0.0
        %1636 = vmatpush1.msra.mxu0 0.0
        %1637 = vmatprep.subr.mxu0 0.0
        %1638 = vmatpush1.msra.mxu0 0.0
        %1639 = vmatprep.subr.mxu0 0.0
        %1640 = vmatpush1.msra.mxu0 0.0
        %1641 = vmatprep.subr.mxu0 0.0
        %1642 = vmatpush1.msra.mxu0 0.0
        %1643 = vmatprep.mubr.f32.mxu0 0.0
        %1644 = vmatmul.mubr.f32.gmra.mrb[0].mxu0 %v1577
        %v1645 = vpop.f32.mrb[0].mxu0
        %v1646 = vadd.f32 0.0, %v1645
        %v1647 = vpop.f32.mrb[0].mxu0
        %1648 = vdwg.mxu0
        %v1650 = vsel %vm1423, %v1563, 0
        %1652 = vmatprep.subr.mxu0 0.0
        %1653 = vmatpush1.msra.mxu0 %v769
        %1654 = vmatprep.subr.mxu0 0.0
        %1655 = vmatpush1.msra.mxu0 0.0
        %1656 = vmatprep.subr.mxu0 0.0
        %1657 = vmatpush1.msra.mxu0 0.0
        %1658 = vmatprep.subr.mxu0 0.0
        %1659 = vmatpush1.msra.mxu0 0.0
        %1660 = vmatprep.subr.mxu0 0.0
        %1661 = vmatpush1.msra.mxu0 0.0
        %1662 = vmatprep.subr.mxu0 0.0
        %1663 = vmatpush1.msra.mxu0 0.0
        %1664 = vmatprep.subr.mxu0 0.0
        %1665 = vmatpush1.msra.mxu0 0.0
        %1666 = vmatprep.subr.mxu0 0.0
        %1667 = vmatpush1.msra.mxu0 0.0
        %1668 = vmatprep.subr.mxu0 0.0
        %1669 = vmatpush1.msra.mxu0 0.0
        %1670 = vmatprep.subr.mxu0 0.0
        %1671 = vmatpush1.msra.mxu0 0.0
        %1672 = vmatprep.subr.mxu0 0.0
        %1673 = vmatpush1.msra.mxu0 0.0
        %1674 = vmatprep.subr.mxu0 0.0
        %1675 = vmatpush1.msra.mxu0 0.0
        %1676 = vmatprep.subr.mxu0 0.0
        %1677 = vmatpush1.msra.mxu0 0.0
        %1678 = vmatprep.subr.mxu0 0.0
        %1679 = vmatpush1.msra.mxu0 0.0
        %1680 = vmatprep.subr.mxu0 0.0
        %1681 = vmatpush1.msra.mxu0 0.0
        %1682 = vmatprep.subr.mxu0 0.0
        %1683 = vmatpush1.msra.mxu0 0.0
        %1684 = vmatprep.subr.mxu0 0.0
        %1685 = vmatpush1.msra.mxu0 0.0
        %1686 = vmatprep.subr.mxu0 0.0
        %1687 = vmatpush1.msra.mxu0 0.0
        %1688 = vmatprep.subr.mxu0 0.0
        %1689 = vmatpush1.msra.mxu0 0.0
        %1690 = vmatprep.subr.mxu0 0.0
        %1691 = vmatpush1.msra.mxu0 0.0
        %1692 = vmatprep.subr.mxu0 0.0
        %1693 = vmatpush1.msra.mxu0 0.0
        %1694 = vmatprep.subr.mxu0 0.0
        %1695 = vmatpush1.msra.mxu0 0.0
        %1696 = vmatprep.subr.mxu0 0.0
        %1697 = vmatpush1.msra.mxu0 0.0
        %1698 = vmatprep.subr.mxu0 0.0
        %1699 = vmatpush1.msra.mxu0 0.0
        %1700 = vmatprep.subr.mxu0 0.0
        %1701 = vmatpush1.msra.mxu0 0.0
        %1702 = vmatprep.subr.mxu0 0.0
        %1703 = vmatpush1.msra.mxu0 0.0
        %1704 = vmatprep.subr.mxu0 0.0
        %1705 = vmatpush1.msra.mxu0 0.0
        %1706 = vmatprep.subr.mxu0 0.0
        %1707 = vmatpush1.msra.mxu0 0.0
        %1708 = vmatprep.subr.mxu0 0.0
        %1709 = vmatpush1.msra.mxu0 0.0
        %1710 = vmatprep.subr.mxu0 0.0
        %1711 = vmatpush1.msra.mxu0 0.0
        %1712 = vmatprep.subr.mxu0 0.0
        %1713 = vmatpush1.msra.mxu0 0.0
        %1714 = vmatprep.subr.mxu0 0.0
        %1715 = vmatpush1.msra.mxu0 0.0
        %1716 = vmatprep.mubr.f32.mxu0 0.0
        %1717 = vmatmul.mubr.f32.gmra.mrb[0].mxu0 %v1650
        %v1718 = vpop.f32.mrb[0].mxu0
        %v1719 = vadd.f32 0.0, %v1718
        %v1720 = vpop.f32.mrb[0].mxu0
        %1721 = vdwg.mxu0
        %v1723 = vsel %vm1423, %v1565, 0
        %1725 = vmatprep.subr.mxu0 0.0
        %1726 = vmatpush1.msra.mxu0 %v774
        %1727 = vmatprep.subr.mxu0 0.0
        %1728 = vmatpush1.msra.mxu0 0.0
        %1729 = vmatprep.subr.mxu0 0.0
        %1730 = vmatpush1.msra.mxu0 0.0
        %1731 = vmatprep.subr.mxu0 0.0
        %1732 = vmatpush1.msra.mxu0 0.0
        %1733 = vmatprep.subr.mxu0 0.0
        %1734 = vmatpush1.msra.mxu0 0.0
        %1735 = vmatprep.subr.mxu0 0.0
        %1736 = vmatpush1.msra.mxu0 0.0
        %1737 = vmatprep.subr.mxu0 0.0
        %1738 = vmatpush1.msra.mxu0 0.0
        %1739 = vmatprep.subr.mxu0 0.0
        %1740 = vmatpush1.msra.mxu0 0.0
        %1741 = vmatprep.subr.mxu0 0.0
        %1742 = vmatpush1.msra.mxu0 0.0
        %1743 = vmatprep.subr.mxu0 0.0
        %1744 = vmatpush1.msra.mxu0 0.0
        %1745 = vmatprep.subr.mxu0 0.0
        %1746 = vmatpush1.msra.mxu0 0.0
        %1747 = vmatprep.subr.mxu0 0.0
        %1748 = vmatpush1.msra.mxu0 0.0
        %1749 = vmatprep.subr.mxu0 0.0
        %1750 = vmatpush1.msra.mxu0 0.0
        %1751 = vmatprep.subr.mxu0 0.0
        %1752 = vmatpush1.msra.mxu0 0.0
        %1753 = vmatprep.subr.mxu0 0.0
        %1754 = vmatpush1.msra.mxu0 0.0
        %1755 = vmatprep.subr.mxu0 0.0
        %1756 = vmatpush1.msra.mxu0 0.0
        %1757 = vmatprep.subr.mxu0 0.0
        %1758 = vmatpush1.msra.mxu0 0.0
        %1759 = vmatprep.subr.mxu0 0.0
        %1760 = vmatpush1.msra.mxu0 0.0
        %1761 = vmatprep.subr.mxu0 0.0
        %1762 = vmatpush1.msra.mxu0 0.0
        %1763 = vmatprep.subr.mxu0 0.0
        %1764 = vmatpush1.msra.mxu0 0.0
        %1765 = vmatprep.subr.mxu0 0.0
        %1766 = vmatpush1.msra.mxu0 0.0
        %1767 = vmatprep.subr.mxu0 0.0
        %1768 = vmatpush1.msra.mxu0 0.0
        %1769 = vmatprep.subr.mxu0 0.0
        %1770 = vmatpush1.msra.mxu0 0.0
        %1771 = vmatprep.subr.mxu0 0.0
        %1772 = vmatpush1.msra.mxu0 0.0
        %1773 = vmatprep.subr.mxu0 0.0
        %1774 = vmatpush1.msra.mxu0 0.0
        %1775 = vmatprep.subr.mxu0 0.0
        %1776 = vmatpush1.msra.mxu0 0.0
        %1777 = vmatprep.subr.mxu0 0.0
        %1778 = vmatpush1.msra.mxu0 0.0
        %1779 = vmatprep.subr.mxu0 0.0
        %1780 = vmatpush1.msra.mxu0 0.0
        %1781 = vmatprep.subr.mxu0 0.0
        %1782 = vmatpush1.msra.mxu0 0.0
        %1783 = vmatprep.subr.mxu0 0.0
        %1784 = vmatpush1.msra.mxu0 0.0
        %1785 = vmatprep.subr.mxu0 0.0
        %1786 = vmatpush1.msra.mxu0 0.0
        %1787 = vmatprep.subr.mxu0 0.0
        %1788 = vmatpush1.msra.mxu0 0.0
        %1789 = vmatprep.mubr.f32.mxu0 0.0
        %1790 = vmatmul.mubr.f32.gmra.mrb[0].mxu0 %v1723
        %v1791 = vpop.f32.mrb[0].mxu0
        %v1792 = vadd.f32 0.0, %v1791
        %v1793 = vpop.f32.mrb[0].mxu0
        %1794 = vdwg.mxu0
        %v1796 = vsel %vm1423, %v1567, 0
        %1798 = vmatprep.subr.mxu0 0.0
        %1799 = vmatpush1.msra.mxu0 %v777
        %1800 = vmatprep.subr.mxu0 0.0
        %1801 = vmatpush1.msra.mxu0 0.0
        %1802 = vmatprep.subr.mxu0 0.0
        %1803 = vmatpush1.msra.mxu0 0.0
        %1804 = vmatprep.subr.mxu0 0.0
        %1805 = vmatpush1.msra.mxu0 0.0
        %1806 = vmatprep.subr.mxu0 0.0
        %1807 = vmatpush1.msra.mxu0 0.0
        %1808 = vmatprep.subr.mxu0 0.0
        %1809 = vmatpush1.msra.mxu0 0.0
        %1810 = vmatprep.subr.mxu0 0.0
        %1811 = vmatpush1.msra.mxu0 0.0
        %1812 = vmatprep.subr.mxu0 0.0
        %1813 = vmatpush1.msra.mxu0 0.0
        %1814 = vmatprep.subr.mxu0 0.0
        %1815 = vmatpush1.msra.mxu0 0.0
        %1816 = vmatprep.subr.mxu0 0.0
        %1817 = vmatpush1.msra.mxu0 0.0
        %1818 = vmatprep.subr.mxu0 0.0
        %1819 = vmatpush1.msra.mxu0 0.0
        %1820 = vmatprep.subr.mxu0 0.0
        %1821 = vmatpush1.msra.mxu0 0.0
        %1822 = vmatprep.subr.mxu0 0.0
        %1823 = vmatpush1.msra.mxu0 0.0
        %1824 = vmatprep.subr.mxu0 0.0
        %1825 = vmatpush1.msra.mxu0 0.0
        %1826 = vmatprep.subr.mxu0 0.0
        %1827 = vmatpush1.msra.mxu0 0.0
        %1828 = vmatprep.subr.mxu0 0.0
        %1829 = vmatpush1.msra.mxu0 0.0
        %1830 = vmatprep.subr.mxu0 0.0
        %1831 = vmatpush1.msra.mxu0 0.0
        %1832 = vmatprep.subr.mxu0 0.0
        %1833 = vmatpush1.msra.mxu0 0.0
        %1834 = vmatprep.subr.mxu0 0.0
        %1835 = vmatpush1.msra.mxu0 0.0
        %1836 = vmatprep.subr.mxu0 0.0
        %1837 = vmatpush1.msra.mxu0 0.0
        %1838 = vmatprep.subr.mxu0 0.0
        %1839 = vmatpush1.msra.mxu0 0.0
        %1840 = vmatprep.subr.mxu0 0.0
        %1841 = vmatpush1.msra.mxu0 0.0
        %1842 = vmatprep.subr.mxu0 0.0
        %1843 = vmatpush1.msra.mxu0 0.0
        %1844 = vmatprep.subr.mxu0 0.0
        %1845 = vmatpush1.msra.mxu0 0.0
        %1846 = vmatprep.subr.mxu0 0.0
        %1847 = vmatpush1.msra.mxu0 0.0
        %1848 = vmatprep.subr.mxu0 0.0
        %1849 = vmatpush1.msra.mxu0 0.0
        %1850 = vmatprep.subr.mxu0 0.0
        %1851 = vmatpush1.msra.mxu0 0.0
        %1852 = vmatprep.subr.mxu0 0.0
        %1853 = vmatpush1.msra.mxu0 0.0
        %1854 = vmatprep.subr.mxu0 0.0
        %1855 = vmatpush1.msra.mxu0 0.0
        %1856 = vmatprep.subr.mxu0 0.0
        %1857 = vmatpush1.msra.mxu0 0.0
        %1858 = vmatprep.subr.mxu0 0.0
        %1859 = vmatpush1.msra.mxu0 0.0
        %1860 = vmatprep.subr.mxu0 0.0
        %1861 = vmatpush1.msra.mxu0 0.0
        %1862 = vmatprep.mubr.f32.mxu0 0.0
        %1863 = vmatmul.mubr.f32.gmra.mrb[0].mxu0 %v1796
        %v1864 = vpop.f32.mrb[0].mxu0
        %v1865 = vadd.f32 0.0, %v1864
        %v1866 = vpop.f32.mrb[0].mxu0
        %1867 = vdwg.mxu0
        %v1869 = vsel %vm1423, %v1569, 0
        %1871 = vmatprep.subr.mxu0 0.0
        %1872 = vmatpush1.msra.mxu0 %v782
        %1873 = vmatprep.subr.mxu0 0.0
        %1874 = vmatpush1.msra.mxu0 0.0
        %1875 = vmatprep.subr.mxu0 0.0
        %1876 = vmatpush1.msra.mxu0 0.0
        %1877 = vmatprep.subr.mxu0 0.0
        %1878 = vmatpush1.msra.mxu0 0.0
        %1879 = vmatprep.subr.mxu0 0.0
        %1880 = vmatpush1.msra.mxu0 0.0
        %1881 = vmatprep.subr.mxu0 0.0
        %1882 = vmatpush1.msra.mxu0 0.0
        %1883 = vmatprep.subr.mxu0 0.0
        %1884 = vmatpush1.msra.mxu0 0.0
        %1885 = vmatprep.subr.mxu0 0.0
        %1886 = vmatpush1.msra.mxu0 0.0
        %1887 = vmatprep.subr.mxu0 0.0
        %1888 = vmatpush1.msra.mxu0 0.0
        %1889 = vmatprep.subr.mxu0 0.0
        %1890 = vmatpush1.msra.mxu0 0.0
        %1891 = vmatprep.subr.mxu0 0.0
        %1892 = vmatpush1.msra.mxu0 0.0
        %1893 = vmatprep.subr.mxu0 0.0
        %1894 = vmatpush1.msra.mxu0 0.0
        %1895 = vmatprep.subr.mxu0 0.0
        %1896 = vmatpush1.msra.mxu0 0.0
        %1897 = vmatprep.subr.mxu0 0.0
        %1898 = vmatpush1.msra.mxu0 0.0
        %1899 = vmatprep.subr.mxu0 0.0
        %1900 = vmatpush1.msra.mxu0 0.0
        %1901 = vmatprep.subr.mxu0 0.0
        %1902 = vmatpush1.msra.mxu0 0.0
        %1903 = vmatprep.subr.mxu0 0.0
        %1904 = vmatpush1.msra.mxu0 0.0
        %1905 = vmatprep.subr.mxu0 0.0
        %1906 = vmatpush1.msra.mxu0 0.0
        %1907 = vmatprep.subr.mxu0 0.0
        %1908 = vmatpush1.msra.mxu0 0.0
        %1909 = vmatprep.subr.mxu0 0.0
        %1910 = vmatpush1.msra.mxu0 0.0
        %1911 = vmatprep.subr.mxu0 0.0
        %1912 = vmatpush1.msra.mxu0 0.0
        %1913 = vmatprep.subr.mxu0 0.0
        %1914 = vmatpush1.msra.mxu0 0.0
        %1915 = vmatprep.subr.mxu0 0.0
        %1916 = vmatpush1.msra.mxu0 0.0
        %1917 = vmatprep.subr.mxu0 0.0
        %1918 = vmatpush1.msra.mxu0 0.0
        %1919 = vmatprep.subr.mxu0 0.0
        %1920 = vmatpush1.msra.mxu0 0.0
        %1921 = vmatprep.subr.mxu0 0.0
        %1922 = vmatpush1.msra.mxu0 0.0
        %1923 = vmatprep.subr.mxu0 0.0
        %1924 = vmatpush1.msra.mxu0 0.0
        %1925 = vmatprep.subr.mxu0 0.0
        %1926 = vmatpush1.msra.mxu0 0.0
        %1927 = vmatprep.subr.mxu0 0.0
        %1928 = vmatpush1.msra.mxu0 0.0
        %1929 = vmatprep.subr.mxu0 0.0
        %1930 = vmatpush1.msra.mxu0 0.0
        %1931 = vmatprep.subr.mxu0 0.0
        %1932 = vmatpush1.msra.mxu0 0.0
        %1933 = vmatprep.subr.mxu0 0.0
        %1934 = vmatpush1.msra.mxu0 0.0
        %1935 = vmatprep.mubr.f32.mxu0 0.0
        %1936 = vmatmul.mubr.f32.gmra.mrb[0].mxu0 %v1869
        %v1937 = vpop.f32.mrb[0].mxu0
        %v1938 = vadd.f32 0.0, %v1937
        %v1939 = vpop.f32.mrb[0].mxu0
        %1940 = vdwg.mxu0
        %v1942 = vsel %vm1423, %v1571, 0
        %1944 = vmatprep.subr.mxu0 0.0
        %1945 = vmatpush1.msra.mxu0 %v785
        %1946 = vmatprep.subr.mxu0 0.0
        %1947 = vmatpush1.msra.mxu0 0.0
        %1948 = vmatprep.subr.mxu0 0.0
        %1949 = vmatpush1.msra.mxu0 0.0
        %1950 = vmatprep.subr.mxu0 0.0
        %1951 = vmatpush1.msra.mxu0 0.0
        %1952 = vmatprep.subr.mxu0 0.0
        %1953 = vmatpush1.msra.mxu0 0.0
        %1954 = vmatprep.subr.mxu0 0.0
        %1955 = vmatpush1.msra.mxu0 0.0
        %1956 = vmatprep.subr.mxu0 0.0
        %1957 = vmatpush1.msra.mxu0 0.0
        %1958 = vmatprep.subr.mxu0 0.0
        %1959 = vmatpush1.msra.mxu0 0.0
        %1960 = vmatprep.subr.mxu0 0.0
        %1961 = vmatpush1.msra.mxu0 0.0
        %1962 = vmatprep.subr.mxu0 0.0
        %1963 = vmatpush1.msra.mxu0 0.0
        %1964 = vmatprep.subr.mxu0 0.0
        %1965 = vmatpush1.msra.mxu0 0.0
        %1966 = vmatprep.subr.mxu0 0.0
        %1967 = vmatpush1.msra.mxu0 0.0
        %1968 = vmatprep.subr.mxu0 0.0
        %1969 = vmatpush1.msra.mxu0 0.0
        %1970 = vmatprep.subr.mxu0 0.0
        %1971 = vmatpush1.msra.mxu0 0.0
        %1972 = vmatprep.subr.mxu0 0.0
        %1973 = vmatpush1.msra.mxu0 0.0
        %1974 = vmatprep.subr.mxu0 0.0
        %1975 = vmatpush1.msra.mxu0 0.0
        %1976 = vmatprep.subr.mxu0 0.0
        %1977 = vmatpush1.msra.mxu0 0.0
        %1978 = vmatprep.subr.mxu0 0.0
        %1979 = vmatpush1.msra.mxu0 0.0
        %1980 = vmatprep.subr.mxu0 0.0
        %1981 = vmatpush1.msra.mxu0 0.0
        %1982 = vmatprep.subr.mxu0 0.0
        %1983 = vmatpush1.msra.mxu0 0.0
        %1984 = vmatprep.subr.mxu0 0.0
        %1985 = vmatpush1.msra.mxu0 0.0
        %1986 = vmatprep.subr.mxu0 0.0
        %1987 = vmatpush1.msra.mxu0 0.0
        %1988 = vmatprep.subr.mxu0 0.0
        %1989 = vmatpush1.msra.mxu0 0.0
        %1990 = vmatprep.subr.mxu0 0.0
        %1991 = vmatpush1.msra.mxu0 0.0
        %1992 = vmatprep.subr.mxu0 0.0
        %1993 = vmatpush1.msra.mxu0 0.0
        %1994 = vmatprep.subr.mxu0 0.0
        %1995 = vmatpush1.msra.mxu0 0.0
        %1996 = vmatprep.subr.mxu0 0.0
        %1997 = vmatpush1.msra.mxu0 0.0
        %1998 = vmatprep.subr.mxu0 0.0
        %1999 = vmatpush1.msra.mxu0 0.0
        %2000 = vmatprep.subr.mxu0 0.0
        %2001 = vmatpush1.msra.mxu0 0.0
        %2002 = vmatprep.subr.mxu0 0.0
        %2003 = vmatpush1.msra.mxu0 0.0
        %2004 = vmatprep.subr.mxu0 0.0
        %2005 = vmatpush1.msra.mxu0 0.0
        %2006 = vmatprep.subr.mxu0 0.0
        %2007 = vmatpush1.msra.mxu0 0.0
        %2008 = vmatprep.mubr.f32.mxu0 0.0
        %2009 = vmatmul.mubr.f32.gmra.mrb[0].mxu0 %v1942
        %v2010 = vpop.f32.mrb[0].mxu0
        %v2011 = vadd.f32 0.0, %v2010
        %v2012 = vpop.f32.mrb[0].mxu0
        %2013 = vdwg.mxu0
        %v2015 = vsel %vm1423, %v1573, 0
        %2017 = vmatprep.subr.mxu0 0.0
        %2018 = vmatpush1.msra.mxu0 %v790
        %2019 = vmatprep.subr.mxu0 0.0
        %2020 = vmatpush1.msra.mxu0 0.0
        %2021 = vmatprep.subr.mxu0 0.0
        %2022 = vmatpush1.msra.mxu0 0.0
        %2023 = vmatprep.subr.mxu0 0.0
        %2024 = vmatpush1.msra.mxu0 0.0
        %2025 = vmatprep.subr.mxu0 0.0
        %2026 = vmatpush1.msra.mxu0 0.0
        %2027 = vmatprep.subr.mxu0 0.0
        %2028 = vmatpush1.msra.mxu0 0.0
        %2029 = vmatprep.subr.mxu0 0.0
        %2030 = vmatpush1.msra.mxu0 0.0
        %2031 = vmatprep.subr.mxu0 0.0
        %2032 = vmatpush1.msra.mxu0 0.0
        %2033 = vmatprep.subr.mxu0 0.0
        %2034 = vmatpush1.msra.mxu0 0.0
        %2035 = vmatprep.subr.mxu0 0.0
        %2036 = vmatpush1.msra.mxu0 0.0
        %2037 = vmatprep.subr.mxu0 0.0
        %2038 = vmatpush1.msra.mxu0 0.0
        %2039 = vmatprep.subr.mxu0 0.0
        %2040 = vmatpush1.msra.mxu0 0.0
        %2041 = vmatprep.subr.mxu0 0.0
        %2042 = vmatpush1.msra.mxu0 0.0
        %2043 = vmatprep.subr.mxu0 0.0
        %2044 = vmatpush1.msra.mxu0 0.0
        %2045 = vmatprep.subr.mxu0 0.0
        %2046 = vmatpush1.msra.mxu0 0.0
        %2047 = vmatprep.subr.mxu0 0.0
        %2048 = vmatpush1.msra.mxu0 0.0
        %2049 = vmatprep.subr.mxu0 0.0
        %2050 = vmatpush1.msra.mxu0 0.0
        %2051 = vmatprep.subr.mxu0 0.0
        %2052 = vmatpush1.msra.mxu0 0.0
        %2053 = vmatprep.subr.mxu0 0.0
        %2054 = vmatpush1.msra.mxu0 0.0
        %2055 = vmatprep.subr.mxu0 0.0
        %2056 = vmatpush1.msra.mxu0 0.0
        %2057 = vmatprep.subr.mxu0 0.0
        %2058 = vmatpush1.msra.mxu0 0.0
        %2059 = vmatprep.subr.mxu0 0.0
        %2060 = vmatpush1.msra.mxu0 0.0
        %2061 = vmatprep.subr.mxu0 0.0
        %2062 = vmatpush1.msra.mxu0 0.0
        %2063 = vmatprep.subr.mxu0 0.0
        %2064 = vmatpush1.msra.mxu0 0.0
        %2065 = vmatprep.subr.mxu0 0.0
        %2066 = vmatpush1.msra.mxu0 0.0
        %2067 = vmatprep.subr.mxu0 0.0
        %2068 = vmatpush1.msra.mxu0 0.0
        %2069 = vmatprep.subr.mxu0 0.0
        %2070 = vmatpush1.msra.mxu0 0.0
        %2071 = vmatprep.subr.mxu0 0.0
        %2072 = vmatpush1.msra.mxu0 0.0
        %2073 = vmatprep.subr.mxu0 0.0
        %2074 = vmatpush1.msra.mxu0 0.0
        %2075 = vmatprep.subr.mxu0 0.0
        %2076 = vmatpush1.msra.mxu0 0.0
        %2077 = vmatprep.subr.mxu0 0.0
        %2078 = vmatpush1.msra.mxu0 0.0
        %2079 = vmatprep.subr.mxu0 0.0
        %2080 = vmatpush1.msra.mxu0 0.0
        %2081 = vmatprep.mubr.f32.mxu0 0.0
        %2082 = vmatmul.mubr.f32.gmra.mrb[0].mxu0 %v2015
        %v2083 = vpop.f32.mrb[0].mxu0
        %v2084 = vadd.f32 0.0, %v2083
        %v2085 = vpop.f32.mrb[0].mxu0
        %2086 = vdwg.mxu0
        %v2088 = vsel %vm1423, %v1575, 0
        %2090 = vmatprep.subr.mxu0 0.0
        %2091 = vmatpush1.msra.mxu0 %v793
        %2092 = vmatprep.subr.mxu0 0.0
        %2093 = vmatpush1.msra.mxu0 0.0
        %2094 = vmatprep.subr.mxu0 0.0
        %2095 = vmatpush1.msra.mxu0 0.0
        %2096 = vmatprep.subr.mxu0 0.0
        %2097 = vmatpush1.msra.mxu0 0.0
        %2098 = vmatprep.subr.mxu0 0.0
        %2099 = vmatpush1.msra.mxu0 0.0
        %2100 = vmatprep.subr.mxu0 0.0
        %2101 = vmatpush1.msra.mxu0 0.0
        %2102 = vmatprep.subr.mxu0 0.0
        %2103 = vmatpush1.msra.mxu0 0.0
        %2104 = vmatprep.subr.mxu0 0.0
        %2105 = vmatpush1.msra.mxu0 0.0
        %2106 = vmatprep.subr.mxu0 0.0
        %2107 = vmatpush1.msra.mxu0 0.0
        %2108 = vmatprep.subr.mxu0 0.0
        %2109 = vmatpush1.msra.mxu0 0.0
        %2110 = vmatprep.subr.mxu0 0.0
        %2111 = vmatpush1.msra.mxu0 0.0
        %2112 = vmatprep.subr.mxu0 0.0
        %2113 = vmatpush1.msra.mxu0 0.0
        %2114 = vmatprep.subr.mxu0 0.0
        %2115 = vmatpush1.msra.mxu0 0.0
        %2116 = vmatprep.subr.mxu0 0.0
        %2117 = vmatpush1.msra.mxu0 0.0
        %2118 = vmatprep.subr.mxu0 0.0
        %2119 = vmatpush1.msra.mxu0 0.0
        %2120 = vmatprep.subr.mxu0 0.0
        %2121 = vmatpush1.msra.mxu0 0.0
        %2122 = vmatprep.subr.mxu0 0.0
        %2123 = vmatpush1.msra.mxu0 0.0
        %2124 = vmatprep.subr.mxu0 0.0
        %2125 = vmatpush1.msra.mxu0 0.0
        %2126 = vmatprep.subr.mxu0 0.0
        %2127 = vmatpush1.msra.mxu0 0.0
        %2128 = vmatprep.subr.mxu0 0.0
        %2129 = vmatpush1.msra.mxu0 0.0
        %2130 = vmatprep.subr.mxu0 0.0
        %2131 = vmatpush1.msra.mxu0 0.0
        %2132 = vmatprep.subr.mxu0 0.0
        %2133 = vmatpush1.msra.mxu0 0.0
        %2134 = vmatprep.subr.mxu0 0.0
        %2135 = vmatpush1.msra.mxu0 0.0
        %2136 = vmatprep.subr.mxu0 0.0
        %2137 = vmatpush1.msra.mxu0 0.0
        %2138 = vmatprep.subr.mxu0 0.0
        %2139 = vmatpush1.msra.mxu0 0.0
        %2140 = vmatprep.subr.mxu0 0.0
        %2141 = vmatpush1.msra.mxu0 0.0
        %2142 = vmatprep.subr.mxu0 0.0
        %2143 = vmatpush1.msra.mxu0 0.0
        %2144 = vmatprep.subr.mxu0 0.0
        %2145 = vmatpush1.msra.mxu0 0.0
        %2146 = vmatprep.subr.mxu0 0.0
        %2147 = vmatpush1.msra.mxu0 0.0
        %2148 = vmatprep.subr.mxu0 0.0
        %2149 = vmatpush1.msra.mxu0 0.0
        %2150 = vmatprep.subr.mxu0 0.0
        %2151 = vmatpush1.msra.mxu0 0.0
        %2152 = vmatprep.subr.mxu0 0.0
        %2153 = vmatpush1.msra.mxu0 0.0
        %2154 = vmatprep.mubr.f32.mxu0 0.0
        %2155 = vmatmul.mubr.f32.gmra.mrb[0].mxu0 %v2088
        %v2156 = vpop.f32.mrb[0].mxu0
        %v2157 = vadd.f32 0.0, %v2156
        %v2158 = vpop.f32.mrb[0].mxu0
        %2159 = vdwg.mxu0
        %v2160 = vpack.c.bf16 %v1719, %v1646
        %v2161 = vpack.c.bf16 %v1865, %v1792
        %v2162 = vpack.c.bf16 %v2011, %v1938
        %v2163 = vpack.c.bf16 %v2157, %v2084
        %v2164 = vld [vmem:[%s6] sm:$0xf]
        %v2165 = vld [vmem:[%s6 + $0x4] sm:$0xf]
        %v2166 = vld [vmem:[%s6 + $0x8] sm:$0xf]
        %v2167 = vld [vmem:[%s6 + $0xc] sm:$0xf]
        %v2168 = vld [vmem:[%s7] sm:$0x1]
        %v2170 = vlaneseq
        %v2171 = vshrl.u32 %v2170, 7
        %v2172 = vsub.s32 0, %v2171
        %v2173 = vrot.slane %v2168, %v2172
        %v2179 = vunpack.c.l.b16 %v2164
        %v2180 = vunpack.c.l.b16 %v2165
        %v2181 = vunpack.c.l.b16 %v2166
        %v2182 = vunpack.c.l.b16 %v2167
        %v2183 = vpack.c.b16 %v2180, %v2179
        %v2184 = vpack.c.b16 %v2182, %v2181
        %v2188 = vsel %vm556, %v2160, 0
        %v2191 = vsel %vm556, %v2161, 0
        %v2194 = vsel %vm556, %v2162, 0
        %v2197 = vsel %vm556, %v2163, 0
        %2199 = vmatprep.subr.bf16.mxu0 0
        %2200 = vmatpush1.bf16.msra.mxu0 %v2183
        %2201 = vmatprep.subr.bf16.mxu0 0
        %2202 = vmatpush1.bf16.msra.mxu0 %v2184
        %2203 = vmatprep.subr.bf16.mxu0 0
        %2204 = vmatpush1.bf16.msra.mxu0 0
        %2205 = vmatprep.subr.bf16.mxu0 0
        %2206 = vmatpush1.bf16.msra.mxu0 0
        %2207 = vmatprep.subr.bf16.mxu0 0
        %2208 = vmatpush1.bf16.msra.mxu0 0
        %2209 = vmatprep.subr.bf16.mxu0 0
        %2210 = vmatpush1.bf16.msra.mxu0 0
        %2211 = vmatprep.subr.bf16.mxu0 0
        %2212 = vmatpush1.bf16.msra.mxu0 0
        %2213 = vmatprep.subr.bf16.mxu0 0
        %2214 = vmatpush1.bf16.msra.mxu0 0
        %2215 = vmatprep.subr.bf16.mxu0 0
        %2216 = vmatpush1.bf16.msra.mxu0 0
        %2217 = vmatprep.subr.bf16.mxu0 0
        %2218 = vmatpush1.bf16.msra.mxu0 0
        %2219 = vmatprep.subr.bf16.mxu0 0
        %2220 = vmatpush1.bf16.msra.mxu0 0
        %2221 = vmatprep.subr.bf16.mxu0 0
        %2222 = vmatpush1.bf16.msra.mxu0 0
        %2223 = vmatprep.subr.bf16.mxu0 0
        %2224 = vmatpush1.bf16.msra.mxu0 0
        %2225 = vmatprep.subr.bf16.mxu0 0
        %2226 = vmatpush1.bf16.msra.mxu0 0
        %2227 = vmatprep.subr.bf16.mxu0 0
        %2228 = vmatpush1.bf16.msra.mxu0 0
        %2229 = vmatprep.subr.bf16.mxu0 0
        %2230 = vmatpush1.bf16.msra.mxu0 0
        %2231 = vmatprep.mubr.bf16.mxu0 0
        %2232 = vmatmul.mubr.bf16.gmra.mrb[0].mxu0 %v2188
        %v2233 = vpop.f32.mrb[0].mxu0
        %v2234 = vadd.f32 %v2173, %v2233
        %v2235 = vpop.f32.mrb[0].mxu0
        %v2236 = vpop.f32.mrb[0].mxu0
        %v2237 = vadd.f32 %v2173, %v2236
        %v2238 = vpop.f32.mrb[0].mxu0
        %2239 = vmatprep.mubr.bf16.mxu0 0
        %2240 = vmatmul.mubr.bf16.gmra.mrb[0].mxu0 %v2191
        %v2241 = vpop.f32.mrb[0].mxu0
        %v2242 = vadd.f32 %v2173, %v2241
        %v2243 = vpop.f32.mrb[0].mxu0
        %v2244 = vpop.f32.mrb[0].mxu0
        %v2245 = vadd.f32 %v2173, %v2244
        %v2246 = vpop.f32.mrb[0].mxu0
        %2247 = vmatprep.mubr.bf16.mxu0 0
        %2248 = vmatmul.mubr.bf16.gmra.mrb[0].mxu0 %v2194
        %v2249 = vpop.f32.mrb[0].mxu0
        %v2250 = vadd.f32 %v2173, %v2249
        %v2251 = vpop.f32.mrb[0].mxu0
        %v2252 = vpop.f32.mrb[0].mxu0
        %v2253 = vadd.f32 %v2173, %v2252
        %v2254 = vpop.f32.mrb[0].mxu0
        %2255 = vmatprep.mubr.bf16.mxu0 0
        %2256 = vmatmul.mubr.bf16.gmra.mrb[0].mxu0 %v2197
        %v2257 = vpop.f32.mrb[0].mxu0
        %v2258 = vadd.f32 %v2173, %v2257
        %v2259 = vpop.f32.mrb[0].mxu0
        %v2260 = vpop.f32.mrb[0].mxu0
        %v2261 = vadd.f32 %v2173, %v2260
        %v2262 = vpop.f32.mrb[0].mxu0
        %2263 = vdwg.mxu0
        %2264 = vst [vmem:[%s299] sm:$0xff] %v2234
        %2265 = vst [vmem:[%s299 + $0x8] sm:$0xff] %v2237
        %2266 = vst [vmem:[%s299 + $0x10] sm:$0xff] %v2242
        %2267 = vst [vmem:[%s299 + $0x18] sm:$0xff] %v2245
        %2268 = vst [vmem:[%s299 + $0x20] sm:$0xff] %v2250
        %2269 = vst [vmem:[%s299 + $0x28] sm:$0xff] %v2253
        %2270 = vst [vmem:[%s299 + $0x30] sm:$0xff] %v2258
        %2271 = vst [vmem:[%s299 + $0x38] sm:$0xff] %v2261
        %s2272 = sand.u32 %s203, 1
        %s2273 = scalar_lea.sflag [#allocation3], %s2272
        %s2274 = sand.u32 %s203, 1
        %s2275 = smul.addr %s2274, 64
        %s2276 = scalar_lea.vmem [#allocation2], %s2275
        // Predicated region
        $region53: #{tpu_custom_call.1} parent=51 // pred_check
          %p2277 = pneg %p213
        $region54: #{tpu_custom_call.1} parent=51 // pred_check_branch
          %2279 = sbr.rel (%p2277) target = $region56
        $region55: #{tpu_custom_call.1} parent=51 // pred_region
          %s2280 = smul.u32 8, %s22
          %s2282 = ssub.s32 1024, 1024
          %2283 = vsyncadd %s2273, %s2282
          %s2284 = smul.addr %s2280, 128
          %s2285 = scalar_lea.hbm %s8, %s2284
          %s2286 = sshll.u32 %s2276, 4
          %s2287 = int_to_ptr.vmem [resolvable:$true] %s2286
          %2292 = dma.vmem_to_hbm [thread:$0]  %s2287, 1024, %s2285, %s2273, 128, 128, 8
        $region56: #{tpu_custom_call.1} parent=51 // pred_fallthru
          _
      $region52: #{tpu_custom_call.1} parent=5 // pred_fallthru
        _
      %p2293 = scmp.le.s32.totalorder 2, %s17
      // Predicated region
      $region57: #{tpu_custom_call.1} parent=5 // pred_check
        %p2294 = pneg %p2293
      $region58: #{tpu_custom_call.1} parent=5 // pred_check_branch
        %2296 = sbr.rel (%p2294) target = $region60
      $region59: #{tpu_custom_call.1} parent=5 // pred_region
        %s2297 = ssub.s32 %s17, 2
        // Predicated region
        $region61: #{tpu_custom_call.1} parent=59 // pred_check
          %p2298 = pneg %p219
        $region62: #{tpu_custom_call.1} parent=59 // pred_check_branch
          %2300 = sbr.rel (%p2298) target = $region64
        $region63: #{tpu_custom_call.1} parent=59 // pred_region
          %s2301 = sand.u32 %s204, 1
          %s2302 = scalar_lea.sflag [#allocation3], %s2301
          %s2303 = sand.u32 %s204, 1
          %s2304 = smul.addr %s2303, 64
          %s2305 = scalar_lea.vmem [#allocation2], %s2304
          %2306 = dma.done %s2302, 1024
        $region64: #{tpu_custom_call.1} parent=59 // pred_fallthru
          _
      $region60: #{tpu_custom_call.1} parent=5 // pred_fallthru
        _
    $region6: #{tpu_custom_call.1} parent=1 // loop_footer
      %s21 = sadd.s32 1, %s17
    $region7: #{tpu_custom_call.1} parent=1 // loop_footer_branch
      %16 = sbr.rel target = $region3
    $region8: #{tpu_custom_call.1} parent=1 // loop_exit
      _
    %2307 = vsyncpa [#allocation3], 1
    %s2308 = scalar_lea.sflag [#allocation3], 1
    %2309 = vsyncpa %s2308, 1

</llo_original>
